<compile_context>
chip_gen: v7x
topology: tpu7x:2x2x1
jax: 0.10.0
libtpu: 0.0.40
codegen_flags: <defaults>
</compile_context>

<pallas_src>
import jax
import jax.numpy as jnp
import numpy as np
from jax import lax
from jax.experimental import pallas as pl
from jax.experimental.pallas import tpu as pltpu

# ---------------- model hyper-parameters (small, synthetic) ----------------
D_MODEL = 32          # d_model
N_HEAD = 4            # nhead
HEAD_DIM = D_MODEL // N_HEAD
DIM_FF = 64           # dim_feedforward
LN_EPS = 1e-5
SEQ = 8               # sequence length
BATCH = 2             # batch size
BS = BATCH * SEQ      # flattened rows (= 2 sublane tiles)

# lane offsets of q / k / v inside the fused (BS, 3*D) projection result
Q_OFF = 0 * D_MODEL
K_OFF = 1 * D_MODEL
V_OFF = 2 * D_MODEL

# -------- packed bias / LayerNorm vector table (one row per vector) --------
PACK_W = max(3 * D_MODEL, DIM_FF)      # 96
R_BQKV = 0                             # row 0 : fused qkv bias (q pre-scaled)
R_BO = 1                               # row 1 : out-proj bias        (D)
R_LN1W = 2                             # row 2 : norm1 weight         (D)
R_LN1B = 3                             # row 3 : norm1 bias           (D)
R_B1 = 4                               # row 4 : linear1 bias         (FF)
R_B2 = 5                               # row 5 : linear2 bias         (D)
R_LN2W = 6                             # row 6 : norm2 weight         (D)
R_LN2B = 7                             # row 7 : norm2 bias           (D)
N_VEC = 8                              # exactly one (8, 128) sublane tile


def _layer_norm(v, w, b, eps):
    mu = jnp.mean(v, axis=-1, keepdims=True)
    var = jnp.mean((v - mu) ** 2, axis=-1, keepdims=True)
    return (v - mu) * jax.lax.rsqrt(var + eps) * w + b


def encoder_layer_kernel(
    x_ref,       # (BS, D)          batch-flattened activations
    wqkv_ref,    # (D, 3D)          fused qkv projection (q columns pre-scaled)
    wo_ref,      # (D, D)           combined out projection
    w1_ref,      # (D, FF)
    w2_ref,      # (FF, D)
    vec_ref,     # (N_VEC, PACK_W)  packed biases / LayerNorm params
    o_ref,       # (BS, D)
):
    # ---- hoisted small-vector loads (single-use, lane-prefix slices) ----
    bqkv = vec_ref[R_BQKV:R_BQKV + 1, 0:3 * D_MODEL]
    bo = vec_ref[R_BO:R_BO + 1, 0:D_MODEL]
    ln1w = vec_ref[R_LN1W:R_LN1W + 1, 0:D_MODEL]
    ln1b = vec_ref[R_LN1B:R_LN1B + 1, 0:D_MODEL]
    b1 = vec_ref[R_B1:R_B1 + 1, 0:DIM_FF]
    b2 = vec_ref[R_B2:R_B2 + 1, 0:D_MODEL]
    ln2w = vec_ref[R_LN2W:R_LN2W + 1, 0:D_MODEL]
    ln2b = vec_ref[R_LN2B:R_LN2B + 1, 0:D_MODEL]

    x = x_ref[...]                                              # (BS, D)

    # ---- fused QKV projection: one lane-dense (16,32)@(32,96) MXU push ----
    qkv = jnp.dot(x, wqkv_ref[...],
                  preferred_element_type=jnp.float32) + bqkv    # (BS, 3D)

    # ---- per-(batch, head) attention on tiny (S,S) tiles -----------------
    # batch rows are 8-aligned sublane slices; head columns are static lane
    # offsets (multiples of 8) into the fused projection result.
    ctx_batches = []
    for b in range(BATCH):                                      # static, B=2
        r0 = b * SEQ
        head_ctx = []
        for h in range(N_HEAD):                                 # static, H=4
            c0 = h * HEAD_DIM
            qh = qkv[r0:r0 + SEQ, Q_OFF + c0:Q_OFF + c0 + HEAD_DIM]   # scaled
            kh = qkv[r0:r0 + SEQ, K_OFF + c0:K_OFF + c0 + HEAD_DIM]
            vh = qkv[r0:r0 + SEQ, V_OFF + c0:V_OFF + c0 + HEAD_DIM]
            # scores = q @ k^T without materializing the transpose
            s = lax.dot_general(qh, kh, (((1,), (1,)), ((), ())),
                                preferred_element_type=jnp.float32)   # (S, S)
            s = s - jnp.max(s, axis=-1, keepdims=True)
            p = jnp.exp(s)
            p = p / jnp.sum(p, axis=-1, keepdims=True)          # exact softmax
            head_ctx.append(jnp.dot(p, vh,
                                    preferred_element_type=jnp.float32))
        ctx_batches.append(jnp.concatenate(head_ctx, axis=-1))  # (S, D)
    ctx = jnp.concatenate(ctx_batches, axis=0)                  # (BS, D)

    # ---- single combined out-projection over the flattened batch ---------
    sa = jnp.dot(ctx, wo_ref[...],
                 preferred_element_type=jnp.float32) + bo       # (BS, D)

    # ---- residual + norm1 (norm_first=False path) -------------------------
    y1 = _layer_norm(x + sa, ln1w, ln1b, LN_EPS)

    # ---- feed-forward: linear2(relu(linear1(y1))) -------------------------
    h1 = jnp.maximum(
        jnp.dot(y1, w1_ref[...], preferred_element_type=jnp.float32) + b1, 0.0)
    ff = jnp.dot(h1, w2_ref[...], preferred_element_type=jnp.float32) + b2

    # ---- residual + norm2, single full-ref lane-dense store ---------------
    o_ref[...] = _layer_norm(y1 + ff, ln2w, ln2b, LN_EPS)


def transformer_encoder_layer(src_sbd, kparams):
    """src_sbd: (S, B, D) float32 (PyTorch batch_first=False layout)."""
    S, B, D = src_sbd.shape
    # 2 KiB wrapper transpose+reshape: gives the kernel an 8-sublane-aligned,
    # contiguous (B*S, D) slab (no strided middle-axis reads in-kernel).
    x_flat = jnp.transpose(src_sbd, (1, 0, 2)).reshape(B * S, D)
    vmem = pl.BlockSpec(memory_space=pltpu.MemorySpace.VMEM)
    out_flat = pl.pallas_call(
        encoder_layer_kernel,
        out_shape=jax.ShapeDtypeStruct((B * S, D), jnp.float32),
        in_specs=[vmem] * 6,
        out_specs=vmem,
    )(
        x_flat,
        kparams["wqkv"], kparams["wo"],
        kparams["w1"], kparams["w2"],
        kparams["vec"],
    )
    return jnp.transpose(out_flat.reshape(B, S, D), (1, 0, 2))   # back to (S,B,D)


# ------------- one-time conversion of PyTorch-style params ----------------
def prepare_kernel_params(p):
    """Fold the attention scale into the q columns of wqkv/bqkv, pack biases."""
    D = D_MODEL
    scale = np.float32(1.0 / np.sqrt(HEAD_DIM))
    col_scale = jnp.concatenate(
        [jnp.full((D,), scale, jnp.float32), jnp.ones((2 * D,), jnp.float32)])

    wqkv = (p["wqkv"] * col_scale[None, :]).astype(jnp.float32)   # (D, 3D)
    bqkv = (p["bqkv"][0] * col_scale).astype(jnp.float32)         # (3D,)

    def row(v):
        return jnp.pad(v, (0, PACK_W - v.shape[0]))

    rows = [row(bqkv),
            row(p["bo"][0]),
            row(p["ln1_w"][0]), row(p["ln1_b"][0]),
            row(p["b1"][0]), row(p["b2"][0]),
            row(p["ln2_w"][0]), row(p["ln2_b"][0])]
    vec = jnp.stack(rows, axis=0).astype(jnp.float32)             # (N_VEC, PACK_W)
    assert vec.shape == (N_VEC, PACK_W)

    return {"wqkv": wqkv, "wo": p["wo"],
            "w1": p["w1"], "w2": p["w2"], "vec": vec}


# ---------------- pure-JAX reference (for correctness check) ----------------
def reference(src_sbd, params):
    x = jnp.transpose(src_sbd, (1, 0, 2))                         # (B, S, D)

    def one(xb):
        qkv = xb @ params["wqkv"] + params["bqkv"][0]
        q, k, v = jnp.split(qkv, 3, axis=-1)
        scale = np.float32(1.0 / np.sqrt(HEAD_DIM))
        ctxs = []
        for h in range(N_HEAD):
            sl = slice(h * HEAD_DIM, (h + 1) * HEAD_DIM)
            s = (q[:, sl] @ k[:, sl].T) * scale
            p = jax.nn.softmax(s, axis=-1)
            ctxs.append(p @ v[:, sl])
        ctx = jnp.concatenate(ctxs, axis=-1)
        sa = ctx @ params["wo"] + params["bo"][0]
        y1 = _layer_norm(xb + sa, params["ln1_w"][0], params["ln1_b"][0], LN_EPS)
        ff = (jnp.maximum(y1 @ params["w1"] + params["b1"][0], 0.0)
              @ params["w2"] + params["b2"][0])
        return _layer_norm(y1 + ff, params["ln2_w"][0], params["ln2_b"][0], LN_EPS)

    out = jax.vmap(one)(x)
    return jnp.transpose(out, (1, 0, 2))


def init_params(key):
    ks = jax.random.split(key, 8)
    scale = 0.05
    return {
        # PyTorch Linear is y = x @ W.T + b ; we store W already transposed.
        "wqkv": scale * jax.random.normal(ks[0], (D_MODEL, 3 * D_MODEL), jnp.float32),
        "bqkv": scale * jax.random.normal(ks[1], (1, 3 * D_MODEL), jnp.float32),
        "wo":   scale * jax.random.normal(ks[2], (D_MODEL, D_MODEL), jnp.float32),
        "bo":   scale * jax.random.normal(ks[3], (1, D_MODEL), jnp.float32),
        "ln1_w": jnp.ones((1, D_MODEL), jnp.float32),
        "ln1_b": jnp.zeros((1, D_MODEL), jnp.float32),
        "w1":   scale * jax.random.normal(ks[4], (D_MODEL, DIM_FF), jnp.float32),
        "b1":   scale * jax.random.normal(ks[5], (1, DIM_FF), jnp.float32),
        "w2":   scale * jax.random.normal(ks[6], (DIM_FF, D_MODEL), jnp.float32),
        "b2":   scale * jax.random.normal(ks[7], (1, D_MODEL), jnp.float32),
        "ln2_w": jnp.ones((1, D_MODEL), jnp.float32),
        "ln2_b": jnp.zeros((1, D_MODEL), jnp.float32),
    }


if __name__ == "__main__":
    key = jax.random.PRNGKey(0)
    k_x, k_p = jax.random.split(key)
    src = jax.random.normal(k_x, (SEQ, BATCH, D_MODEL), jnp.float32)   # (S, B, D)
    params = init_params(k_p)
    kparams = prepare_kernel_params(params)    # one-time weight-format conversion

    out = transformer_encoder_layer(src, kparams)
    out = jax.block_until_ready(out)

    ref = jax.block_until_ready(reference(src, params))
    # Exact softmax divide is used in the kernel, so only f32 reassociation
    # noise remains between kernel and reference.
    np.testing.assert_allclose(np.asarray(out), np.asarray(ref), rtol=2e-5, atol=2e-5)

    assert out.shape == (SEQ, BATCH, D_MODEL)
    print("KERNEL_OK")
</pallas_src>

<mosaic_0001>
module attributes {stable_mosaic.version = 11 : i64} {
  func.func @encoder_layer_kernel(%arg0: memref<16x32xf32, #tpu.memory_space<vmem>>, %arg1: memref<32x96xf32, #tpu.memory_space<vmem>>, %arg2: memref<32x32xf32, #tpu.memory_space<vmem>>, %arg3: memref<32x64xf32, #tpu.memory_space<vmem>>, %arg4: memref<64x32xf32, #tpu.memory_space<vmem>>, %arg5: memref<8x96xf32, #tpu.memory_space<vmem>>, %arg6: memref<16x32xf32, #tpu.memory_space<vmem>>) attributes {dimension_semantics = [], scalar_prefetch = 0 : i64, scratch_operands = 0 : i64, tpu.core_type = #tpu.core_type<tc>} {
    %c0 = arith.constant 0 : index
    %c0_0 = arith.constant 0 : index
    %0 = vector.load %arg5[%c0, %c0_0] : memref<8x96xf32, #tpu.memory_space<vmem>>, vector<1x96xf32>
    %c1 = arith.constant 1 : index
    %c0_1 = arith.constant 0 : index
    %1 = vector.load %arg5[%c1, %c0_1] : memref<8x96xf32, #tpu.memory_space<vmem>>, vector<1x32xf32>
    %c2 = arith.constant 2 : index
    %c0_2 = arith.constant 0 : index
    %2 = vector.load %arg5[%c2, %c0_2] : memref<8x96xf32, #tpu.memory_space<vmem>>, vector<1x32xf32>
    %c3 = arith.constant 3 : index
    %c0_3 = arith.constant 0 : index
    %3 = vector.load %arg5[%c3, %c0_3] : memref<8x96xf32, #tpu.memory_space<vmem>>, vector<1x32xf32>
    %c4 = arith.constant 4 : index
    %c0_4 = arith.constant 0 : index
    %4 = vector.load %arg5[%c4, %c0_4] : memref<8x96xf32, #tpu.memory_space<vmem>>, vector<1x64xf32>
    %c5 = arith.constant 5 : index
    %c0_5 = arith.constant 0 : index
    %5 = vector.load %arg5[%c5, %c0_5] : memref<8x96xf32, #tpu.memory_space<vmem>>, vector<1x32xf32>
    %c6 = arith.constant 6 : index
    %c0_6 = arith.constant 0 : index
    %6 = vector.load %arg5[%c6, %c0_6] : memref<8x96xf32, #tpu.memory_space<vmem>>, vector<1x32xf32>
    %c7 = arith.constant 7 : index
    %c0_7 = arith.constant 0 : index
    %7 = vector.load %arg5[%c7, %c0_7] : memref<8x96xf32, #tpu.memory_space<vmem>>, vector<1x32xf32>
    %c0_8 = arith.constant 0 : index
    %c0_9 = arith.constant 0 : index
    %8 = vector.load %arg0[%c0_8, %c0_9] : memref<16x32xf32, #tpu.memory_space<vmem>>, vector<16x32xf32>
    %c0_10 = arith.constant 0 : index
    %c0_11 = arith.constant 0 : index
    %9 = vector.load %arg1[%c0_10, %c0_11] : memref<32x96xf32, #tpu.memory_space<vmem>>, vector<32x96xf32>
    %cst = arith.constant dense<0.000000e+00> : vector<16x96xf32>
    %10 = tpu.matmul %8, %9, %cst {dimension_numbers = #tpu.dot_dimension_numbers<[1], [0], [0], [1], [0, 0, 1, 1], [], []>} : vector<16x32xf32>, vector<32x96xf32>, vector<16x96xf32> -> vector<16x96xf32>
    %11 = vector.broadcast %0 : vector<1x96xf32> to vector<16x96xf32>
    %12 = arith.addf %10, %11 : vector<16x96xf32>
    %13 = vector.extract_strided_slice %12 {offsets = [0, 0], sizes = [8, 8], strides = [1, 1]} : vector<16x96xf32> to vector<8x8xf32>
    %14 = vector.extract_strided_slice %12 {offsets = [0, 32], sizes = [8, 8], strides = [1, 1]} : vector<16x96xf32> to vector<8x8xf32>
    %15 = vector.extract_strided_slice %12 {offsets = [0, 64], sizes = [8, 8], strides = [1, 1]} : vector<16x96xf32> to vector<8x8xf32>
    %cst_12 = arith.constant dense<0.000000e+00> : vector<8x8xf32>
    %16 = tpu.matmul %13, %14, %cst_12 {dimension_numbers = #tpu.dot_dimension_numbers<[1], [1], [0], [0], [0, 0, 1, 0], [], []>} : vector<8x8xf32>, vector<8x8xf32>, vector<8x8xf32> -> vector<8x8xf32>
    %cst_13 = arith.constant dense<0xFF800000> : vector<8xf32>
    %17 = vector.multi_reduction <maximumf>, %16, %cst_13 [1] : vector<8x8xf32> to vector<8xf32>
    %18 = vector.shape_cast %17 : vector<8xf32> to vector<8x1xf32>
    %19 = vector.broadcast %18 : vector<8x1xf32> to vector<8x8xf32>
    %20 = arith.subf %16, %19 : vector<8x8xf32>
    %21 = math.exp %20 : vector<8x8xf32>
    %cst_14 = arith.constant dense<0.000000e+00> : vector<8xf32>
    %22 = vector.multi_reduction <add>, %21, %cst_14 [1] : vector<8x8xf32> to vector<8xf32>
    %23 = vector.shape_cast %22 : vector<8xf32> to vector<8x1xf32>
    %24 = vector.broadcast %23 : vector<8x1xf32> to vector<8x8xf32>
    %25 = arith.divf %21, %24 : vector<8x8xf32>
    %cst_15 = arith.constant dense<0.000000e+00> : vector<8x8xf32>
    %26 = tpu.matmul %25, %15, %cst_15 {dimension_numbers = #tpu.dot_dimension_numbers<[1], [0], [0], [1], [0, 0, 1, 1], [], []>} : vector<8x8xf32>, vector<8x8xf32>, vector<8x8xf32> -> vector<8x8xf32>
    %27 = vector.extract_strided_slice %12 {offsets = [0, 8], sizes = [8, 8], strides = [1, 1]} : vector<16x96xf32> to vector<8x8xf32>
    %28 = vector.extract_strided_slice %12 {offsets = [0, 40], sizes = [8, 8], strides = [1, 1]} : vector<16x96xf32> to vector<8x8xf32>
    %29 = vector.extract_strided_slice %12 {offsets = [0, 72], sizes = [8, 8], strides = [1, 1]} : vector<16x96xf32> to vector<8x8xf32>
    %cst_16 = arith.constant dense<0.000000e+00> : vector<8x8xf32>
    %30 = tpu.matmul %27, %28, %cst_16 {dimension_numbers = #tpu.dot_dimension_numbers<[1], [1], [0], [0], [0, 0, 1, 0], [], []>} : vector<8x8xf32>, vector<8x8xf32>, vector<8x8xf32> -> vector<8x8xf32>
    %cst_17 = arith.constant dense<0xFF800000> : vector<8xf32>
    %31 = vector.multi_reduction <maximumf>, %30, %cst_17 [1] : vector<8x8xf32> to vector<8xf32>
    %32 = vector.shape_cast %31 : vector<8xf32> to vector<8x1xf32>
    %33 = vector.broadcast %32 : vector<8x1xf32> to vector<8x8xf32>
    %34 = arith.subf %30, %33 : vector<8x8xf32>
    %35 = math.exp %34 : vector<8x8xf32>
    %cst_18 = arith.constant dense<0.000000e+00> : vector<8xf32>
    %36 = vector.multi_reduction <add>, %35, %cst_18 [1] : vector<8x8xf32> to vector<8xf32>
    %37 = vector.shape_cast %36 : vector<8xf32> to vector<8x1xf32>
    %38 = vector.broadcast %37 : vector<8x1xf32> to vector<8x8xf32>
    %39 = arith.divf %35, %38 : vector<8x8xf32>
    %cst_19 = arith.constant dense<0.000000e+00> : vector<8x8xf32>
    %40 = tpu.matmul %39, %29, %cst_19 {dimension_numbers = #tpu.dot_dimension_numbers<[1], [0], [0], [1], [0, 0, 1, 1], [], []>} : vector<8x8xf32>, vector<8x8xf32>, vector<8x8xf32> -> vector<8x8xf32>
    %41 = vector.extract_strided_slice %12 {offsets = [0, 16], sizes = [8, 8], strides = [1, 1]} : vector<16x96xf32> to vector<8x8xf32>
    %42 = vector.extract_strided_slice %12 {offsets = [0, 48], sizes = [8, 8], strides = [1, 1]} : vector<16x96xf32> to vector<8x8xf32>
    %43 = vector.extract_strided_slice %12 {offsets = [0, 80], sizes = [8, 8], strides = [1, 1]} : vector<16x96xf32> to vector<8x8xf32>
    %cst_20 = arith.constant dense<0.000000e+00> : vector<8x8xf32>
    %44 = tpu.matmul %41, %42, %cst_20 {dimension_numbers = #tpu.dot_dimension_numbers<[1], [1], [0], [0], [0, 0, 1, 0], [], []>} : vector<8x8xf32>, vector<8x8xf32>, vector<8x8xf32> -> vector<8x8xf32>
    %cst_21 = arith.constant dense<0xFF800000> : vector<8xf32>
    %45 = vector.multi_reduction <maximumf>, %44, %cst_21 [1] : vector<8x8xf32> to vector<8xf32>
    %46 = vector.shape_cast %45 : vector<8xf32> to vector<8x1xf32>
    %47 = vector.broadcast %46 : vector<8x1xf32> to vector<8x8xf32>
    %48 = arith.subf %44, %47 : vector<8x8xf32>
    %49 = math.exp %48 : vector<8x8xf32>
    %cst_22 = arith.constant dense<0.000000e+00> : vector<8xf32>
    %50 = vector.multi_reduction <add>, %49, %cst_22 [1] : vector<8x8xf32> to vector<8xf32>
    %51 = vector.shape_cast %50 : vector<8xf32> to vector<8x1xf32>
    %52 = vector.broadcast %51 : vector<8x1xf32> to vector<8x8xf32>
    %53 = arith.divf %49, %52 : vector<8x8xf32>
    %cst_23 = arith.constant dense<0.000000e+00> : vector<8x8xf32>
    %54 = tpu.matmul %53, %43, %cst_23 {dimension_numbers = #tpu.dot_dimension_numbers<[1], [0], [0], [1], [0, 0, 1, 1], [], []>} : vector<8x8xf32>, vector<8x8xf32>, vector<8x8xf32> -> vector<8x8xf32>
    %55 = vector.extract_strided_slice %12 {offsets = [0, 24], sizes = [8, 8], strides = [1, 1]} : vector<16x96xf32> to vector<8x8xf32>
    %56 = vector.extract_strided_slice %12 {offsets = [0, 56], sizes = [8, 8], strides = [1, 1]} : vector<16x96xf32> to vector<8x8xf32>
    %57 = vector.extract_strided_slice %12 {offsets = [0, 88], sizes = [8, 8], strides = [1, 1]} : vector<16x96xf32> to vector<8x8xf32>
    %cst_24 = arith.constant dense<0.000000e+00> : vector<8x8xf32>
    %58 = tpu.matmul %55, %56, %cst_24 {dimension_numbers = #tpu.dot_dimension_numbers<[1], [1], [0], [0], [0, 0, 1, 0], [], []>} : vector<8x8xf32>, vector<8x8xf32>, vector<8x8xf32> -> vector<8x8xf32>
    %cst_25 = arith.constant dense<0xFF800000> : vector<8xf32>
    %59 = vector.multi_reduction <maximumf>, %58, %cst_25 [1] : vector<8x8xf32> to vector<8xf32>
    %60 = vector.shape_cast %59 : vector<8xf32> to vector<8x1xf32>
    %61 = vector.broadcast %60 : vector<8x1xf32> to vector<8x8xf32>
    %62 = arith.subf %58, %61 : vector<8x8xf32>
    %63 = math.exp %62 : vector<8x8xf32>
    %cst_26 = arith.constant dense<0.000000e+00> : vector<8xf32>
    %64 = vector.multi_reduction <add>, %63, %cst_26 [1] : vector<8x8xf32> to vector<8xf32>
    %65 = vector.shape_cast %64 : vector<8xf32> to vector<8x1xf32>
    %66 = vector.broadcast %65 : vector<8x1xf32> to vector<8x8xf32>
    %67 = arith.divf %63, %66 : vector<8x8xf32>
    %cst_27 = arith.constant dense<0.000000e+00> : vector<8x8xf32>
    %68 = tpu.matmul %67, %57, %cst_27 {dimension_numbers = #tpu.dot_dimension_numbers<[1], [0], [0], [1], [0, 0, 1, 1], [], []>} : vector<8x8xf32>, vector<8x8xf32>, vector<8x8xf32> -> vector<8x8xf32>
    %69 = tpu.concatenate %26, %40, %54, %68 in 1 : vector<8x8xf32>, vector<8x8xf32>, vector<8x8xf32>, vector<8x8xf32> -> vector<8x32xf32>
    %70 = vector.extract_strided_slice %12 {offsets = [8, 0], sizes = [8, 8], strides = [1, 1]} : vector<16x96xf32> to vector<8x8xf32>
    %71 = vector.extract_strided_slice %12 {offsets = [8, 32], sizes = [8, 8], strides = [1, 1]} : vector<16x96xf32> to vector<8x8xf32>
    %72 = vector.extract_strided_slice %12 {offsets = [8, 64], sizes = [8, 8], strides = [1, 1]} : vector<16x96xf32> to vector<8x8xf32>
    %cst_28 = arith.constant dense<0.000000e+00> : vector<8x8xf32>
    %73 = tpu.matmul %70, %71, %cst_28 {dimension_numbers = #tpu.dot_dimension_numbers<[1], [1], [0], [0], [0, 0, 1, 0], [], []>} : vector<8x8xf32>, vector<8x8xf32>, vector<8x8xf32> -> vector<8x8xf32>
    %cst_29 = arith.constant dense<0xFF800000> : vector<8xf32>
    %74 = vector.multi_reduction <maximumf>, %73, %cst_29 [1] : vector<8x8xf32> to vector<8xf32>
    %75 = vector.shape_cast %74 : vector<8xf32> to vector<8x1xf32>
    %76 = vector.broadcast %75 : vector<8x1xf32> to vector<8x8xf32>
    %77 = arith.subf %73, %76 : vector<8x8xf32>
    %78 = math.exp %77 : vector<8x8xf32>
    %cst_30 = arith.constant dense<0.000000e+00> : vector<8xf32>
    %79 = vector.multi_reduction <add>, %78, %cst_30 [1] : vector<8x8xf32> to vector<8xf32>
    %80 = vector.shape_cast %79 : vector<8xf32> to vector<8x1xf32>
    %81 = vector.broadcast %80 : vector<8x1xf32> to vector<8x8xf32>
    %82 = arith.divf %78, %81 : vector<8x8xf32>
    %cst_31 = arith.constant dense<0.000000e+00> : vector<8x8xf32>
    %83 = tpu.matmul %82, %72, %cst_31 {dimension_numbers = #tpu.dot_dimension_numbers<[1], [0], [0], [1], [0, 0, 1, 1], [], []>} : vector<8x8xf32>, vector<8x8xf32>, vector<8x8xf32> -> vector<8x8xf32>
    %84 = vector.extract_strided_slice %12 {offsets = [8, 8], sizes = [8, 8], strides = [1, 1]} : vector<16x96xf32> to vector<8x8xf32>
    %85 = vector.extract_strided_slice %12 {offsets = [8, 40], sizes = [8, 8], strides = [1, 1]} : vector<16x96xf32> to vector<8x8xf32>
    %86 = vector.extract_strided_slice %12 {offsets = [8, 72], sizes = [8, 8], strides = [1, 1]} : vector<16x96xf32> to vector<8x8xf32>
    %cst_32 = arith.constant dense<0.000000e+00> : vector<8x8xf32>
    %87 = tpu.matmul %84, %85, %cst_32 {dimension_numbers = #tpu.dot_dimension_numbers<[1], [1], [0], [0], [0, 0, 1, 0], [], []>} : vector<8x8xf32>, vector<8x8xf32>, vector<8x8xf32> -> vector<8x8xf32>
    %cst_33 = arith.constant dense<0xFF800000> : vector<8xf32>
    %88 = vector.multi_reduction <maximumf>, %87, %cst_33 [1] : vector<8x8xf32> to vector<8xf32>
    %89 = vector.shape_cast %88 : vector<8xf32> to vector<8x1xf32>
    %90 = vector.broadcast %89 : vector<8x1xf32> to vector<8x8xf32>
    %91 = arith.subf %87, %90 : vector<8x8xf32>
    %92 = math.exp %91 : vector<8x8xf32>
    %cst_34 = arith.constant dense<0.000000e+00> : vector<8xf32>
    %93 = vector.multi_reduction <add>, %92, %cst_34 [1] : vector<8x8xf32> to vector<8xf32>
    %94 = vector.shape_cast %93 : vector<8xf32> to vector<8x1xf32>
    %95 = vector.broadcast %94 : vector<8x1xf32> to vector<8x8xf32>
    %96 = arith.divf %92, %95 : vector<8x8xf32>
    %cst_35 = arith.constant dense<0.000000e+00> : vector<8x8xf32>
    %97 = tpu.matmul %96, %86, %cst_35 {dimension_numbers = #tpu.dot_dimension_numbers<[1], [0], [0], [1], [0, 0, 1, 1], [], []>} : vector<8x8xf32>, vector<8x8xf32>, vector<8x8xf32> -> vector<8x8xf32>
    %98 = vector.extract_strided_slice %12 {offsets = [8, 16], sizes = [8, 8], strides = [1, 1]} : vector<16x96xf32> to vector<8x8xf32>
    %99 = vector.extract_strided_slice %12 {offsets = [8, 48], sizes = [8, 8], strides = [1, 1]} : vector<16x96xf32> to vector<8x8xf32>
    %100 = vector.extract_strided_slice %12 {offsets = [8, 80], sizes = [8, 8], strides = [1, 1]} : vector<16x96xf32> to vector<8x8xf32>
    %cst_36 = arith.constant dense<0.000000e+00> : vector<8x8xf32>
    %101 = tpu.matmul %98, %99, %cst_36 {dimension_numbers = #tpu.dot_dimension_numbers<[1], [1], [0], [0], [0, 0, 1, 0], [], []>} : vector<8x8xf32>, vector<8x8xf32>, vector<8x8xf32> -> vector<8x8xf32>
    %cst_37 = arith.constant dense<0xFF800000> : vector<8xf32>
    %102 = vector.multi_reduction <maximumf>, %101, %cst_37 [1] : vector<8x8xf32> to vector<8xf32>
    %103 = vector.shape_cast %102 : vector<8xf32> to vector<8x1xf32>
    %104 = vector.broadcast %103 : vector<8x1xf32> to vector<8x8xf32>
    %105 = arith.subf %101, %104 : vector<8x8xf32>
    %106 = math.exp %105 : vector<8x8xf32>
    %cst_38 = arith.constant dense<0.000000e+00> : vector<8xf32>
    %107 = vector.multi_reduction <add>, %106, %cst_38 [1] : vector<8x8xf32> to vector<8xf32>
    %108 = vector.shape_cast %107 : vector<8xf32> to vector<8x1xf32>
    %109 = vector.broadcast %108 : vector<8x1xf32> to vector<8x8xf32>
    %110 = arith.divf %106, %109 : vector<8x8xf32>
    %cst_39 = arith.constant dense<0.000000e+00> : vector<8x8xf32>
    %111 = tpu.matmul %110, %100, %cst_39 {dimension_numbers = #tpu.dot_dimension_numbers<[1], [0], [0], [1], [0, 0, 1, 1], [], []>} : vector<8x8xf32>, vector<8x8xf32>, vector<8x8xf32> -> vector<8x8xf32>
    %112 = vector.extract_strided_slice %12 {offsets = [8, 24], sizes = [8, 8], strides = [1, 1]} : vector<16x96xf32> to vector<8x8xf32>
    %113 = vector.extract_strided_slice %12 {offsets = [8, 56], sizes = [8, 8], strides = [1, 1]} : vector<16x96xf32> to vector<8x8xf32>
    %114 = vector.extract_strided_slice %12 {offsets = [8, 88], sizes = [8, 8], strides = [1, 1]} : vector<16x96xf32> to vector<8x8xf32>
    %cst_40 = arith.constant dense<0.000000e+00> : vector<8x8xf32>
    %115 = tpu.matmul %112, %113, %cst_40 {dimension_numbers = #tpu.dot_dimension_numbers<[1], [1], [0], [0], [0, 0, 1, 0], [], []>} : vector<8x8xf32>, vector<8x8xf32>, vector<8x8xf32> -> vector<8x8xf32>
    %cst_41 = arith.constant dense<0xFF800000> : vector<8xf32>
    %116 = vector.multi_reduction <maximumf>, %115, %cst_41 [1] : vector<8x8xf32> to vector<8xf32>
    %117 = vector.shape_cast %116 : vector<8xf32> to vector<8x1xf32>
    %118 = vector.broadcast %117 : vector<8x1xf32> to vector<8x8xf32>
    %119 = arith.subf %115, %118 : vector<8x8xf32>
    %120 = math.exp %119 : vector<8x8xf32>
    %cst_42 = arith.constant dense<0.000000e+00> : vector<8xf32>
    %121 = vector.multi_reduction <add>, %120, %cst_42 [1] : vector<8x8xf32> to vector<8xf32>
    %122 = vector.shape_cast %121 : vector<8xf32> to vector<8x1xf32>
    %123 = vector.broadcast %122 : vector<8x1xf32> to vector<8x8xf32>
    %124 = arith.divf %120, %123 : vector<8x8xf32>
    %cst_43 = arith.constant dense<0.000000e+00> : vector<8x8xf32>
    %125 = tpu.matmul %124, %114, %cst_43 {dimension_numbers = #tpu.dot_dimension_numbers<[1], [0], [0], [1], [0, 0, 1, 1], [], []>} : vector<8x8xf32>, vector<8x8xf32>, vector<8x8xf32> -> vector<8x8xf32>
    %126 = tpu.concatenate %83, %97, %111, %125 in 1 : vector<8x8xf32>, vector<8x8xf32>, vector<8x8xf32>, vector<8x8xf32> -> vector<8x32xf32>
    %127 = tpu.concatenate %69, %126 in 0 : vector<8x32xf32>, vector<8x32xf32> -> vector<16x32xf32>
    %c0_44 = arith.constant 0 : index
    %c0_45 = arith.constant 0 : index
    %128 = vector.load %arg2[%c0_44, %c0_45] : memref<32x32xf32, #tpu.memory_space<vmem>>, vector<32x32xf32>
    %cst_46 = arith.constant dense<0.000000e+00> : vector<16x32xf32>
    %129 = tpu.matmul %127, %128, %cst_46 {dimension_numbers = #tpu.dot_dimension_numbers<[1], [0], [0], [1], [0, 0, 1, 1], [], []>} : vector<16x32xf32>, vector<32x32xf32>, vector<16x32xf32> -> vector<16x32xf32>
    %130 = vector.broadcast %1 : vector<1x32xf32> to vector<16x32xf32>
    %131 = arith.addf %129, %130 : vector<16x32xf32>
    %132 = arith.addf %8, %131 : vector<16x32xf32>
    %cst_47 = arith.constant dense<0.000000e+00> : vector<16xf32>
    %133 = vector.multi_reduction <add>, %132, %cst_47 [1] : vector<16x32xf32> to vector<16xf32>
    %134 = vector.shape_cast %133 : vector<16xf32> to vector<16x1xf32>
    %cst_48 = arith.constant 3.200000e+01 : f32
    %135 = vector.broadcast %cst_48 : f32 to vector<16x1xf32>
    %136 = arith.divf %134, %135 : vector<16x1xf32>
    %137 = vector.broadcast %136 : vector<16x1xf32> to vector<16x32xf32>
    %138 = arith.subf %132, %137 : vector<16x32xf32>
    %139 = arith.mulf %138, %138 : vector<16x32xf32>
    %cst_49 = arith.constant dense<0.000000e+00> : vector<16xf32>
    %140 = vector.multi_reduction <add>, %139, %cst_49 [1] : vector<16x32xf32> to vector<16xf32>
    %141 = vector.shape_cast %140 : vector<16xf32> to vector<16x1xf32>
    %cst_50 = arith.constant 3.200000e+01 : f32
    %142 = vector.broadcast %cst_50 : f32 to vector<16x1xf32>
    %143 = arith.divf %141, %142 : vector<16x1xf32>
    %144 = vector.broadcast %136 : vector<16x1xf32> to vector<16x32xf32>
    %145 = arith.subf %132, %144 : vector<16x32xf32>
    %cst_51 = arith.constant 9.99999974E-6 : f32
    %146 = vector.broadcast %cst_51 : f32 to vector<16x1xf32>
    %147 = arith.addf %143, %146 : vector<16x1xf32>
    %148 = math.rsqrt %147 : vector<16x1xf32>
    %149 = vector.broadcast %148 : vector<16x1xf32> to vector<16x32xf32>
    %150 = arith.mulf %145, %149 : vector<16x32xf32>
    %151 = vector.broadcast %2 : vector<1x32xf32> to vector<16x32xf32>
    %152 = arith.mulf %150, %151 : vector<16x32xf32>
    %153 = vector.broadcast %3 : vector<1x32xf32> to vector<16x32xf32>
    %154 = arith.addf %152, %153 : vector<16x32xf32>
    %c0_52 = arith.constant 0 : index
    %c0_53 = arith.constant 0 : index
    %155 = vector.load %arg3[%c0_52, %c0_53] : memref<32x64xf32, #tpu.memory_space<vmem>>, vector<32x64xf32>
    %cst_54 = arith.constant dense<0.000000e+00> : vector<16x64xf32>
    %156 = tpu.matmul %154, %155, %cst_54 {dimension_numbers = #tpu.dot_dimension_numbers<[1], [0], [0], [1], [0, 0, 1, 1], [], []>} : vector<16x32xf32>, vector<32x64xf32>, vector<16x64xf32> -> vector<16x64xf32>
    %157 = vector.broadcast %4 : vector<1x64xf32> to vector<16x64xf32>
    %158 = arith.addf %156, %157 : vector<16x64xf32>
    %cst_55 = arith.constant 0.000000e+00 : f32
    %159 = vector.broadcast %cst_55 : f32 to vector<16x64xf32>
    %160 = arith.maximumf %158, %159 : vector<16x64xf32>
    %c0_56 = arith.constant 0 : index
    %c0_57 = arith.constant 0 : index
    %161 = vector.load %arg4[%c0_56, %c0_57] : memref<64x32xf32, #tpu.memory_space<vmem>>, vector<64x32xf32>
    %cst_58 = arith.constant dense<0.000000e+00> : vector<16x32xf32>
    %162 = tpu.matmul %160, %161, %cst_58 {dimension_numbers = #tpu.dot_dimension_numbers<[1], [0], [0], [1], [0, 0, 1, 1], [], []>} : vector<16x64xf32>, vector<64x32xf32>, vector<16x32xf32> -> vector<16x32xf32>
    %163 = vector.broadcast %5 : vector<1x32xf32> to vector<16x32xf32>
    %164 = arith.addf %162, %163 : vector<16x32xf32>
    %165 = arith.addf %154, %164 : vector<16x32xf32>
    %cst_59 = arith.constant dense<0.000000e+00> : vector<16xf32>
    %166 = vector.multi_reduction <add>, %165, %cst_59 [1] : vector<16x32xf32> to vector<16xf32>
    %167 = vector.shape_cast %166 : vector<16xf32> to vector<16x1xf32>
    %cst_60 = arith.constant 3.200000e+01 : f32
    %168 = vector.broadcast %cst_60 : f32 to vector<16x1xf32>
    %169 = arith.divf %167, %168 : vector<16x1xf32>
    %170 = vector.broadcast %169 : vector<16x1xf32> to vector<16x32xf32>
    %171 = arith.subf %165, %170 : vector<16x32xf32>
    %172 = arith.mulf %171, %171 : vector<16x32xf32>
    %cst_61 = arith.constant dense<0.000000e+00> : vector<16xf32>
    %173 = vector.multi_reduction <add>, %172, %cst_61 [1] : vector<16x32xf32> to vector<16xf32>
    %174 = vector.shape_cast %173 : vector<16xf32> to vector<16x1xf32>
    %cst_62 = arith.constant 3.200000e+01 : f32
    %175 = vector.broadcast %cst_62 : f32 to vector<16x1xf32>
    %176 = arith.divf %174, %175 : vector<16x1xf32>
    %177 = vector.broadcast %169 : vector<16x1xf32> to vector<16x32xf32>
    %178 = arith.subf %165, %177 : vector<16x32xf32>
    %cst_63 = arith.constant 9.99999974E-6 : f32
    %179 = vector.broadcast %cst_63 : f32 to vector<16x1xf32>
    %180 = arith.addf %176, %179 : vector<16x1xf32>
    %181 = math.rsqrt %180 : vector<16x1xf32>
    %182 = vector.broadcast %181 : vector<16x1xf32> to vector<16x32xf32>
    %183 = arith.mulf %178, %182 : vector<16x32xf32>
    %184 = vector.broadcast %6 : vector<1x32xf32> to vector<16x32xf32>
    %185 = arith.mulf %183, %184 : vector<16x32xf32>
    %186 = vector.broadcast %7 : vector<1x32xf32> to vector<16x32xf32>
    %187 = arith.addf %185, %186 : vector<16x32xf32>
    %c0_64 = arith.constant 0 : index
    %c0_65 = arith.constant 0 : index
    %188 = vector.load %arg6[%c0_64, %c0_65] : memref<16x32xf32, #tpu.memory_space<vmem>>, vector<16x32xf32>
    tpu.vector_store %arg6[%c0_64, %c0_65], %187 {strides = array<i32>} : memref<16x32xf32, #tpu.memory_space<vmem>>, vector<16x32xf32>,
    return
  }
}

</mosaic_0001>

<llo_original>
// kernel: tpu_custom_call.1
$region0: #{tpu_custom_call.1}
  #allocation0 [shape = 'u32[]', space=smem, size = 0x4, offset = 0x4, fixed_abs, tag = 'smem constant byte address 0x4 - core index']
  #allocation1 [shape = 'u32[144,128]{1,0:T(1,128)}', space=vmem, size = 0x12000, scoped, tag = 'internal scratch']
  %s0 = inlined_call_operand.hbm [shape: f32[16,32], index: 0, kind: input, shape index: {}]
  %s1 = inlined_call_operand.vmem [shape: f32[32,96], index: 1, kind: input, shape index: {}]
  %s2 = inlined_call_operand.vmem [shape: f32[32,32], index: 2, kind: input, shape index: {}]
  %s3 = inlined_call_operand.vmem [shape: f32[32,64], index: 3, kind: input, shape index: {}]
  %s4 = inlined_call_operand.vmem [shape: f32[64,32], index: 4, kind: input, shape index: {}]
  %s5 = inlined_call_operand.vmem [shape: f32[8,96], index: 5, kind: input, shape index: {}]
  %s6 = inlined_call_operand.hbm [shape: f32[16,32], index: 6, kind: output, shape index: {}]
  %s7 = sld [smem:[#allocation0]]
  $region38: #{tpu_custom_call.1} parent=0
    _
  %s9 = ssub.s32 1, %s7
  %s10 = scalar_select 0, %s9, %s7
  $region1: #{tpu_custom_call.1} parent=0
    #allocation2 [shape = 'u8[8192]{0}', space=vmem, size = 0x2000, scoped, tag = 'input window, operand 0, single buffered']
    #allocation3 [shape = 's32[1]{0}', space=sflag, size = 0x4, scoped, tag = 'scoped memory for tpu_custom_call.1']
    #allocation4 [shape = 's32[1]{0}', space=sflag, size = 0x4, scoped, tag = 'scoped memory for tpu_custom_call.1']
    #allocation5 [shape = 'u8[8192]{0}', space=vmem, size = 0x2000, scoped, tag = 'output window, operand 0, single buffered']
    %11 = vsyncpa [#allocation3], 0
    %12 = vsyncpa [#allocation4], 0
    // Predicated region
    $region2: #{tpu_custom_call.1} parent=1 // pred_check
      _
    $region3: #{tpu_custom_call.1} parent=1 // pred_check_branch
      %14 = sbr.rel (0) target = $region5
    $region4: #{tpu_custom_call.1} parent=1 // pred_region
      %s16 = ssub.s32 256, 256
      %17 = vsyncadd [#allocation3], %s16
      %s18 = sshll.u32 [#allocation2], 4
      %s19 = int_to_ptr.vmem [resolvable:$true] %s18
      %24 = dma.hbm_to_vmem [thread:$0]  %s0, 256, %s19, [#allocation3], 128, 128, 8
    $region5: #{tpu_custom_call.1} parent=1 // pred_fallthru
      _
    // Predicated region
    $region6: #{tpu_custom_call.1} parent=1 // pred_check
      _
    $region7: #{tpu_custom_call.1} parent=1 // pred_check_branch
      %26 = sbr.rel (0) target = $region9
    $region8: #{tpu_custom_call.1} parent=1 // pred_region
      _
    $region9: #{tpu_custom_call.1} parent=1 // pred_fallthru
      _
    // Predicated region
    $region10: #{tpu_custom_call.1} parent=1 // pred_check
      _
    $region11: #{tpu_custom_call.1} parent=1 // pred_check_branch
      %28 = sbr.rel (0) target = $region13
    $region12: #{tpu_custom_call.1} parent=1 // pred_region
      _
    $region13: #{tpu_custom_call.1} parent=1 // pred_fallthru
      _
    // Predicated region
    $region14: #{tpu_custom_call.1} parent=1 // pred_check
      _
    $region15: #{tpu_custom_call.1} parent=1 // pred_check_branch
      %30 = sbr.rel (0) target = $region17
    $region16: #{tpu_custom_call.1} parent=1 // pred_region
      _
    $region17: #{tpu_custom_call.1} parent=1 // pred_fallthru
      _
    // Predicated region
    $region18: #{tpu_custom_call.1} parent=1 // pred_check
      _
    $region19: #{tpu_custom_call.1} parent=1 // pred_check_branch
      %32 = sbr.rel (0) target = $region21
    $region20: #{tpu_custom_call.1} parent=1 // pred_region
      _
    $region21: #{tpu_custom_call.1} parent=1 // pred_fallthru
      _
    // Predicated region
    $region22: #{tpu_custom_call.1} parent=1 // pred_check
      _
    $region23: #{tpu_custom_call.1} parent=1 // pred_check_branch
      %34 = sbr.rel (0) target = $region25
    $region24: #{tpu_custom_call.1} parent=1 // pred_region
      _
    $region25: #{tpu_custom_call.1} parent=1 // pred_fallthru
      _
    // Predicated region
    $region26: #{tpu_custom_call.1} parent=1 // pred_check
      _
    $region27: #{tpu_custom_call.1} parent=1 // pred_check_branch
      %36 = sbr.rel (0) target = $region29
    $region28: #{tpu_custom_call.1} parent=1 // pred_region
      %37 = dma.done [#allocation3], 256
    $region29: #{tpu_custom_call.1} parent=1 // pred_fallthru
      _
    %v38 = vld [vmem:[%s5] sm:$0x1]
    %v39 = vld [vmem:[%s5 + $0x1] sm:$0x1]
    %v40 = vld [vmem:[%s5 + $0x2] sm:$0x1]
    %v41 = vld [vmem:[%s5 + $0x3] sm:$0x1]
    %v42 = vld [vmem:[%s5 + $0x4] sm:$0x1]
    %v43 = vld [vmem:[%s5 + $0x5] sm:$0x1]
    %v44 = vld [vmem:[%s5 + $0x6] sm:$0x1]
    %v45 = vld [vmem:[%s5 + $0x7] sm:$0x1]
    %v46 = vld [vmem:[#allocation2] sm:$0xff]
    %v47 = vld [vmem:[#allocation2 + $0x8] sm:$0xff]
    %v48 = vld [vmem:[%s1] sm:$0xff]
    %v49 = vld [vmem:[%s1 + $0x8] sm:$0xff]
    %v50 = vld [vmem:[%s1 + $0x10] sm:$0xff]
    %v51 = vld [vmem:[%s1 + $0x18] sm:$0xff]
    %v52 = vlaneseq
    %v53 = vshrl.u32 %v52, 7
    %v54 = vsub.s32 0, %v53
    %v55 = vrot.slane %v38, %v54
    %vm56 = vcmask 261120
    %v58 = vsel %vm56, %v46, 0
    %v61 = vsel %vm56, %v47, 0
    %63 = vmatprep.subr.mxu0 0.0
    %64 = vmatpush1.msra.mxu0 %v48
    %65 = vmatprep.subr.mxu0 0.0
    %66 = vmatpush1.msra.mxu0 %v49
    %67 = vmatprep.subr.mxu0 0.0
    %68 = vmatpush1.msra.mxu0 %v50
    %69 = vmatprep.subr.mxu0 0.0
    %70 = vmatpush1.msra.mxu0 %v51
    %71 = vmatprep.subr.mxu0 0.0
    %72 = vmatpush1.msra.mxu0 0.0
    %73 = vmatprep.subr.mxu0 0.0
    %74 = vmatpush1.msra.mxu0 0.0
    %75 = vmatprep.subr.mxu0 0.0
    %76 = vmatpush1.msra.mxu0 0.0
    %77 = vmatprep.subr.mxu0 0.0
    %78 = vmatpush1.msra.mxu0 0.0
    %79 = vmatprep.subr.mxu0 0.0
    %80 = vmatpush1.msra.mxu0 0.0
    %81 = vmatprep.subr.mxu0 0.0
    %82 = vmatpush1.msra.mxu0 0.0
    %83 = vmatprep.subr.mxu0 0.0
    %84 = vmatpush1.msra.mxu0 0.0
    %85 = vmatprep.subr.mxu0 0.0
    %86 = vmatpush1.msra.mxu0 0.0
    %87 = vmatprep.subr.mxu0 0.0
    %88 = vmatpush1.msra.mxu0 0.0
    %89 = vmatprep.subr.mxu0 0.0
    %90 = vmatpush1.msra.mxu0 0.0
    %91 = vmatprep.subr.mxu0 0.0
    %92 = vmatpush1.msra.mxu0 0.0
    %93 = vmatprep.subr.mxu0 0.0
    %94 = vmatpush1.msra.mxu0 0.0
    %95 = vmatprep.subr.mxu0 0.0
    %96 = vmatpush1.msra.mxu0 0.0
    %97 = vmatprep.subr.mxu0 0.0
    %98 = vmatpush1.msra.mxu0 0.0
    %99 = vmatprep.subr.mxu0 0.0
    %100 = vmatpush1.msra.mxu0 0.0
    %101 = vmatprep.subr.mxu0 0.0
    %102 = vmatpush1.msra.mxu0 0.0
    %103 = vmatprep.subr.mxu0 0.0
    %104 = vmatpush1.msra.mxu0 0.0
    %105 = vmatprep.subr.mxu0 0.0
    %106 = vmatpush1.msra.mxu0 0.0
    %107 = vmatprep.subr.mxu0 0.0
    %108 = vmatpush1.msra.mxu0 0.0
    %109 = vmatprep.subr.mxu0 0.0
    %110 = vmatpush1.msra.mxu0 0.0
    %111 = vmatprep.subr.mxu0 0.0
    %112 = vmatpush1.msra.mxu0 0.0
    %113 = vmatprep.subr.mxu0 0.0
    %114 = vmatpush1.msra.mxu0 0.0
    %115 = vmatprep.subr.mxu0 0.0
    %116 = vmatpush1.msra.mxu0 0.0
    %117 = vmatprep.subr.mxu0 0.0
    %118 = vmatpush1.msra.mxu0 0.0
    %119 = vmatprep.subr.mxu0 0.0
    %120 = vmatpush1.msra.mxu0 0.0
    %121 = vmatprep.subr.mxu0 0.0
    %122 = vmatpush1.msra.mxu0 0.0
    %123 = vmatprep.subr.mxu0 0.0
    %124 = vmatpush1.msra.mxu0 0.0
    %125 = vmatprep.subr.mxu0 0.0
    %126 = vmatpush1.msra.mxu0 0.0
    %127 = vmatprep.mubr.f32.mxu0 0.0
    %128 = vmatmul.mubr.f32.gmra.mrb[0].mxu0 %v58
    %v129 = vpop.f32.mrb[0].mxu0
    %v130 = vadd.f32 %v55, %v129
    %v131 = vpop.f32.mrb[0].mxu0
    %132 = vmatprep.mubr.f32.mxu0 0.0
    %133 = vmatmul.mubr.f32.gmra.mrb[0].mxu0 %v61
    %v134 = vpop.f32.mrb[0].mxu0
    %v135 = vadd.f32 %v55, %v134
    %v136 = vpop.f32.mrb[0].mxu0
    %137 = vdwg.mxu0
    %139 = vrot.lane.b32.xlu0 %v130, 96
    %v140 = vpop.permute.xlu0 %139
    %vm141 = vcmask 64512
    %v142 = vsel %vm141, %v130, 0
    %v144 = vsel %vm141, %v140, 0
    %146 = vmatprep.subr.mxu0 0.0
    %147 = vmatpush1.xpose.msra.mxu0 %v144
    %148 = vmatprep.subr.mxu0 0.0
    %149 = vmatpush1.xpose.msra.mxu0 0.0
    %150 = vmatprep.subr.mxu0 0.0
    %151 = vmatpush1.xpose.msra.mxu0 0.0
    %152 = vmatprep.subr.mxu0 0.0
    %153 = vmatpush1.xpose.msra.mxu0 0.0
    %154 = vmatprep.subr.mxu0 0.0
    %155 = vmatpush1.xpose.msra.mxu0 0.0
    %156 = vmatprep.subr.mxu0 0.0
    %157 = vmatpush1.xpose.msra.mxu0 0.0
    %158 = vmatprep.subr.mxu0 0.0
    %159 = vmatpush1.xpose.msra.mxu0 0.0
    %160 = vmatprep.subr.mxu0 0.0
    %161 = vmatpush1.xpose.msra.mxu0 0.0
    %162 = vmatprep.subr.mxu0 0.0
    %163 = vmatpush1.xpose.msra.mxu0 0.0
    %164 = vmatprep.subr.mxu0 0.0
    %165 = vmatpush1.xpose.msra.mxu0 0.0
    %166 = vmatprep.subr.mxu0 0.0
    %167 = vmatpush1.xpose.msra.mxu0 0.0
    %168 = vmatprep.subr.mxu0 0.0
    %169 = vmatpush1.xpose.msra.mxu0 0.0
    %170 = vmatprep.subr.mxu0 0.0
    %171 = vmatpush1.xpose.msra.mxu0 0.0
    %172 = vmatprep.subr.mxu0 0.0
    %173 = vmatpush1.xpose.msra.mxu0 0.0
    %174 = vmatprep.subr.mxu0 0.0
    %175 = vmatpush1.xpose.msra.mxu0 0.0
    %176 = vmatprep.subr.mxu0 0.0
    %177 = vmatpush1.xpose.msra.mxu0 0.0
    %178 = vmatprep.subr.mxu0 0.0
    %179 = vmatpush1.xpose.msra.mxu0 0.0
    %180 = vmatprep.subr.mxu0 0.0
    %181 = vmatpush1.xpose.msra.mxu0 0.0
    %182 = vmatprep.subr.mxu0 0.0
    %183 = vmatpush1.xpose.msra.mxu0 0.0
    %184 = vmatprep.subr.mxu0 0.0
    %185 = vmatpush1.xpose.msra.mxu0 0.0
    %186 = vmatprep.subr.mxu0 0.0
    %187 = vmatpush1.xpose.msra.mxu0 0.0
    %188 = vmatprep.subr.mxu0 0.0
    %189 = vmatpush1.xpose.msra.mxu0 0.0
    %190 = vmatprep.subr.mxu0 0.0
    %191 = vmatpush1.xpose.msra.mxu0 0.0
    %192 = vmatprep.subr.mxu0 0.0
    %193 = vmatpush1.xpose.msra.mxu0 0.0
    %194 = vmatprep.subr.mxu0 0.0
    %195 = vmatpush1.xpose.msra.mxu0 0.0
    %196 = vmatprep.subr.mxu0 0.0
    %197 = vmatpush1.xpose.msra.mxu0 0.0
    %198 = vmatprep.subr.mxu0 0.0
    %199 = vmatpush1.xpose.msra.mxu0 0.0
    %200 = vmatprep.subr.mxu0 0.0
    %201 = vmatpush1.xpose.msra.mxu0 0.0
    %202 = vmatprep.subr.mxu0 0.0
    %203 = vmatpush1.xpose.msra.mxu0 0.0
    %204 = vmatprep.subr.mxu0 0.0
    %205 = vmatpush1.xpose.msra.mxu0 0.0
    %206 = vmatprep.subr.mxu0 0.0
    %207 = vmatpush1.xpose.msra.mxu0 0.0
    %208 = vmatprep.subr.mxu0 0.0
    %209 = vmatpush1.xpose.msra.mxu0 0.0
    %210 = vmatprep.mubr.f32.mxu0 0.0
    %211 = vmatmul.mubr.f32.gmra.mrb[0].mxu0 %v142
    %v212 = vpop.f32.mrb[0].mxu0
    %v213 = vadd.f32 0.0, %v212
    %v214 = vpop.f32.mrb[0].mxu0
    %215 = vdwg.mxu0
    %v216 = vsel %vm141, %v213, -inf
    %217 = vmax.xlane.f32.xlu0 %v216
    %v218 = vpop.xlane.xlu0 %217
    %v219 = vsub.f32 %v213, %v218
    %v220 = vmul.f32 %v219, 1.442695
    %v221 = vpow.pop %v220
    %v222 = vsel %vm141, %v221, 0.0
    %223 = vadd.xlane.f32.xlu0 %v222
    %v224 = vpop.xlane.xlu0 %223
    %v225 = vrcp.pop %v224
    %v226 = vmul.f32 %v221, %v225
    %227 = vrot.lane.b32.xlu0 %v130, 64
    %v228 = vpop.permute.xlu0 %227
    %v231 = vsel %vm141, %v226, 0
    %233 = vmatprep.subr.mxu0 0.0
    %234 = vmatpush1.msra.mxu0 %v228
    %235 = vmatprep.subr.mxu0 0.0
    %236 = vmatpush1.msra.mxu0 0.0
    %237 = vmatprep.subr.mxu0 0.0
    %238 = vmatpush1.msra.mxu0 0.0
    %239 = vmatprep.subr.mxu0 0.0
    %240 = vmatpush1.msra.mxu0 0.0
    %241 = vmatprep.subr.mxu0 0.0
    %242 = vmatpush1.msra.mxu0 0.0
    %243 = vmatprep.subr.mxu0 0.0
    %244 = vmatpush1.msra.mxu0 0.0
    %245 = vmatprep.subr.mxu0 0.0
    %246 = vmatpush1.msra.mxu0 0.0
    %247 = vmatprep.subr.mxu0 0.0
    %248 = vmatpush1.msra.mxu0 0.0
    %249 = vmatprep.subr.mxu0 0.0
    %250 = vmatpush1.msra.mxu0 0.0
    %251 = vmatprep.subr.mxu0 0.0
    %252 = vmatpush1.msra.mxu0 0.0
    %253 = vmatprep.subr.mxu0 0.0
    %254 = vmatpush1.msra.mxu0 0.0
    %255 = vmatprep.subr.mxu0 0.0
    %256 = vmatpush1.msra.mxu0 0.0
    %257 = vmatprep.subr.mxu0 0.0
    %258 = vmatpush1.msra.mxu0 0.0
    %259 = vmatprep.subr.mxu0 0.0
    %260 = vmatpush1.msra.mxu0 0.0
    %261 = vmatprep.subr.mxu0 0.0
    %262 = vmatpush1.msra.mxu0 0.0
    %263 = vmatprep.subr.mxu0 0.0
    %264 = vmatpush1.msra.mxu0 0.0
    %265 = vmatprep.subr.mxu0 0.0
    %266 = vmatpush1.msra.mxu0 0.0
    %267 = vmatprep.subr.mxu0 0.0
    %268 = vmatpush1.msra.mxu0 0.0
    %269 = vmatprep.subr.mxu0 0.0
    %270 = vmatpush1.msra.mxu0 0.0
    %271 = vmatprep.subr.mxu0 0.0
    %272 = vmatpush1.msra.mxu0 0.0
    %273 = vmatprep.subr.mxu0 0.0
    %274 = vmatpush1.msra.mxu0 0.0
    %275 = vmatprep.subr.mxu0 0.0
    %276 = vmatpush1.msra.mxu0 0.0
    %277 = vmatprep.subr.mxu0 0.0
    %278 = vmatpush1.msra.mxu0 0.0
    %279 = vmatprep.subr.mxu0 0.0
    %280 = vmatpush1.msra.mxu0 0.0
    %281 = vmatprep.subr.mxu0 0.0
    %282 = vmatpush1.msra.mxu0 0.0
    %283 = vmatprep.subr.mxu0 0.0
    %284 = vmatpush1.msra.mxu0 0.0
    %285 = vmatprep.subr.mxu0 0.0
    %286 = vmatpush1.msra.mxu0 0.0
    %287 = vmatprep.subr.mxu0 0.0
    %288 = vmatpush1.msra.mxu0 0.0
    %289 = vmatprep.subr.mxu0 0.0
    %290 = vmatpush1.msra.mxu0 0.0
    %291 = vmatprep.subr.mxu0 0.0
    %292 = vmatpush1.msra.mxu0 0.0
    %293 = vmatprep.subr.mxu0 0.0
    %294 = vmatpush1.msra.mxu0 0.0
    %295 = vmatprep.subr.mxu0 0.0
    %296 = vmatpush1.msra.mxu0 0.0
    %297 = vmatprep.mubr.f32.mxu0 0.0
    %298 = vmatmul.mubr.f32.gmra.mrb[0].mxu0 %v231
    %v299 = vpop.f32.mrb[0].mxu0
    %v300 = vadd.f32 0.0, %v299
    %v301 = vpop.f32.mrb[0].mxu0
    %302 = vdwg.mxu0
    %303 = vrot.lane.b32.xlu0 %v130, 120
    %v304 = vpop.permute.xlu0 %303
    %305 = vrot.lane.b32.xlu0 %v130, 88
    %v306 = vpop.permute.xlu0 %305
    %v307 = vsel %vm141, %v304, 0
    %v309 = vsel %vm141, %v306, 0
    %311 = vmatprep.subr.mxu0 0.0
    %312 = vmatpush1.xpose.msra.mxu0 %v309
    %313 = vmatprep.subr.mxu0 0.0
    %314 = vmatpush1.xpose.msra.mxu0 0.0
    %315 = vmatprep.subr.mxu0 0.0
    %316 = vmatpush1.xpose.msra.mxu0 0.0
    %317 = vmatprep.subr.mxu0 0.0
    %318 = vmatpush1.xpose.msra.mxu0 0.0
    %319 = vmatprep.subr.mxu0 0.0
    %320 = vmatpush1.xpose.msra.mxu0 0.0
    %321 = vmatprep.subr.mxu0 0.0
    %322 = vmatpush1.xpose.msra.mxu0 0.0
    %323 = vmatprep.subr.mxu0 0.0
    %324 = vmatpush1.xpose.msra.mxu0 0.0
    %325 = vmatprep.subr.mxu0 0.0
    %326 = vmatpush1.xpose.msra.mxu0 0.0
    %327 = vmatprep.subr.mxu0 0.0
    %328 = vmatpush1.xpose.msra.mxu0 0.0
    %329 = vmatprep.subr.mxu0 0.0
    %330 = vmatpush1.xpose.msra.mxu0 0.0
    %331 = vmatprep.subr.mxu0 0.0
    %332 = vmatpush1.xpose.msra.mxu0 0.0
    %333 = vmatprep.subr.mxu0 0.0
    %334 = vmatpush1.xpose.msra.mxu0 0.0
    %335 = vmatprep.subr.mxu0 0.0
    %336 = vmatpush1.xpose.msra.mxu0 0.0
    %337 = vmatprep.subr.mxu0 0.0
    %338 = vmatpush1.xpose.msra.mxu0 0.0
    %339 = vmatprep.subr.mxu0 0.0
    %340 = vmatpush1.xpose.msra.mxu0 0.0
    %341 = vmatprep.subr.mxu0 0.0
    %342 = vmatpush1.xpose.msra.mxu0 0.0
    %343 = vmatprep.subr.mxu0 0.0
    %344 = vmatpush1.xpose.msra.mxu0 0.0
    %345 = vmatprep.subr.mxu0 0.0
    %346 = vmatpush1.xpose.msra.mxu0 0.0
    %347 = vmatprep.subr.mxu0 0.0
    %348 = vmatpush1.xpose.msra.mxu0 0.0
    %349 = vmatprep.subr.mxu0 0.0
    %350 = vmatpush1.xpose.msra.mxu0 0.0
    %351 = vmatprep.subr.mxu0 0.0
    %352 = vmatpush1.xpose.msra.mxu0 0.0
    %353 = vmatprep.subr.mxu0 0.0
    %354 = vmatpush1.xpose.msra.mxu0 0.0
    %355 = vmatprep.subr.mxu0 0.0
    %356 = vmatpush1.xpose.msra.mxu0 0.0
    %357 = vmatprep.subr.mxu0 0.0
    %358 = vmatpush1.xpose.msra.mxu0 0.0
    %359 = vmatprep.subr.mxu0 0.0
    %360 = vmatpush1.xpose.msra.mxu0 0.0
    %361 = vmatprep.subr.mxu0 0.0
    %362 = vmatpush1.xpose.msra.mxu0 0.0
    %363 = vmatprep.subr.mxu0 0.0
    %364 = vmatpush1.xpose.msra.mxu0 0.0
    %365 = vmatprep.subr.mxu0 0.0
    %366 = vmatpush1.xpose.msra.mxu0 0.0
    %367 = vmatprep.subr.mxu0 0.0
    %368 = vmatpush1.xpose.msra.mxu0 0.0
    %369 = vmatprep.subr.mxu0 0.0
    %370 = vmatpush1.xpose.msra.mxu0 0.0
    %371 = vmatprep.subr.mxu0 0.0
    %372 = vmatpush1.xpose.msra.mxu0 0.0
    %373 = vmatprep.subr.mxu0 0.0
    %374 = vmatpush1.xpose.msra.mxu0 0.0
    %375 = vmatprep.mubr.f32.mxu0 0.0
    %376 = vmatmul.mubr.f32.gmra.mrb[0].mxu0 %v307
    %v377 = vpop.f32.mrb[0].mxu0
    %v378 = vadd.f32 0.0, %v377
    %v379 = vpop.f32.mrb[0].mxu0
    %380 = vdwg.mxu0
    %v381 = vsel %vm141, %v378, -inf
    %382 = vmax.xlane.f32.xlu0 %v381
    %v383 = vpop.xlane.xlu0 %382
    %v384 = vsub.f32 %v378, %v383
    %v385 = vmul.f32 %v384, 1.442695
    %v386 = vpow.pop %v385
    %v387 = vsel %vm141, %v386, 0.0
    %388 = vadd.xlane.f32.xlu0 %v387
    %v389 = vpop.xlane.xlu0 %388
    %v390 = vrcp.pop %v389
    %v391 = vmul.f32 %v386, %v390
    %392 = vrot.lane.b32.xlu0 %v130, 56
    %v393 = vpop.permute.xlu0 %392
    %v396 = vsel %vm141, %v391, 0
    %398 = vmatprep.subr.mxu0 0.0
    %399 = vmatpush1.msra.mxu0 %v393
    %400 = vmatprep.subr.mxu0 0.0
    %401 = vmatpush1.msra.mxu0 0.0
    %402 = vmatprep.subr.mxu0 0.0
    %403 = vmatpush1.msra.mxu0 0.0
    %404 = vmatprep.subr.mxu0 0.0
    %405 = vmatpush1.msra.mxu0 0.0
    %406 = vmatprep.subr.mxu0 0.0
    %407 = vmatpush1.msra.mxu0 0.0
    %408 = vmatprep.subr.mxu0 0.0
    %409 = vmatpush1.msra.mxu0 0.0
    %410 = vmatprep.subr.mxu0 0.0
    %411 = vmatpush1.msra.mxu0 0.0
    %412 = vmatprep.subr.mxu0 0.0
    %413 = vmatpush1.msra.mxu0 0.0
    %414 = vmatprep.subr.mxu0 0.0
    %415 = vmatpush1.msra.mxu0 0.0
    %416 = vmatprep.subr.mxu0 0.0
    %417 = vmatpush1.msra.mxu0 0.0
    %418 = vmatprep.subr.mxu0 0.0
    %419 = vmatpush1.msra.mxu0 0.0
    %420 = vmatprep.subr.mxu0 0.0
    %421 = vmatpush1.msra.mxu0 0.0
    %422 = vmatprep.subr.mxu0 0.0
    %423 = vmatpush1.msra.mxu0 0.0
    %424 = vmatprep.subr.mxu0 0.0
    %425 = vmatpush1.msra.mxu0 0.0
    %426 = vmatprep.subr.mxu0 0.0
    %427 = vmatpush1.msra.mxu0 0.0
    %428 = vmatprep.subr.mxu0 0.0
    %429 = vmatpush1.msra.mxu0 0.0
    %430 = vmatprep.subr.mxu0 0.0
    %431 = vmatpush1.msra.mxu0 0.0
    %432 = vmatprep.subr.mxu0 0.0
    %433 = vmatpush1.msra.mxu0 0.0
    %434 = vmatprep.subr.mxu0 0.0
    %435 = vmatpush1.msra.mxu0 0.0
    %436 = vmatprep.subr.mxu0 0.0
    %437 = vmatpush1.msra.mxu0 0.0
    %438 = vmatprep.subr.mxu0 0.0
    %439 = vmatpush1.msra.mxu0 0.0
    %440 = vmatprep.subr.mxu0 0.0
    %441 = vmatpush1.msra.mxu0 0.0
    %442 = vmatprep.subr.mxu0 0.0
    %443 = vmatpush1.msra.mxu0 0.0
    %444 = vmatprep.subr.mxu0 0.0
    %445 = vmatpush1.msra.mxu0 0.0
    %446 = vmatprep.subr.mxu0 0.0
    %447 = vmatpush1.msra.mxu0 0.0
    %448 = vmatprep.subr.mxu0 0.0
    %449 = vmatpush1.msra.mxu0 0.0
    %450 = vmatprep.subr.mxu0 0.0
    %451 = vmatpush1.msra.mxu0 0.0
    %452 = vmatprep.subr.mxu0 0.0
    %453 = vmatpush1.msra.mxu0 0.0
    %454 = vmatprep.subr.mxu0 0.0
    %455 = vmatpush1.msra.mxu0 0.0
    %456 = vmatprep.subr.mxu0 0.0
    %457 = vmatpush1.msra.mxu0 0.0
    %458 = vmatprep.subr.mxu0 0.0
    %459 = vmatpush1.msra.mxu0 0.0
    %460 = vmatprep.subr.mxu0 0.0
    %461 = vmatpush1.msra.mxu0 0.0
    %462 = vmatprep.mubr.f32.mxu0 0.0
    %463 = vmatmul.mubr.f32.gmra.mrb[0].mxu0 %v396
    %v464 = vpop.f32.mrb[0].mxu0
    %v465 = vadd.f32 0.0, %v464
    %v466 = vpop.f32.mrb[0].mxu0
    %467 = vdwg.mxu0
    %468 = vrot.lane.b32.xlu0 %v130, 112
    %v469 = vpop.permute.xlu0 %468
    %470 = vrot.lane.b32.xlu0 %v130, 80
    %v471 = vpop.permute.xlu0 %470
    %v472 = vsel %vm141, %v469, 0
    %v474 = vsel %vm141, %v471, 0
    %476 = vmatprep.subr.mxu0 0.0
    %477 = vmatpush1.xpose.msra.mxu0 %v474
    %478 = vmatprep.subr.mxu0 0.0
    %479 = vmatpush1.xpose.msra.mxu0 0.0
    %480 = vmatprep.subr.mxu0 0.0
    %481 = vmatpush1.xpose.msra.mxu0 0.0
    %482 = vmatprep.subr.mxu0 0.0
    %483 = vmatpush1.xpose.msra.mxu0 0.0
    %484 = vmatprep.subr.mxu0 0.0
    %485 = vmatpush1.xpose.msra.mxu0 0.0
    %486 = vmatprep.subr.mxu0 0.0
    %487 = vmatpush1.xpose.msra.mxu0 0.0
    %488 = vmatprep.subr.mxu0 0.0
    %489 = vmatpush1.xpose.msra.mxu0 0.0
    %490 = vmatprep.subr.mxu0 0.0
    %491 = vmatpush1.xpose.msra.mxu0 0.0
    %492 = vmatprep.subr.mxu0 0.0
    %493 = vmatpush1.xpose.msra.mxu0 0.0
    %494 = vmatprep.subr.mxu0 0.0
    %495 = vmatpush1.xpose.msra.mxu0 0.0
    %496 = vmatprep.subr.mxu0 0.0
    %497 = vmatpush1.xpose.msra.mxu0 0.0
    %498 = vmatprep.subr.mxu0 0.0
    %499 = vmatpush1.xpose.msra.mxu0 0.0
    %500 = vmatprep.subr.mxu0 0.0
    %501 = vmatpush1.xpose.msra.mxu0 0.0
    %502 = vmatprep.subr.mxu0 0.0
    %503 = vmatpush1.xpose.msra.mxu0 0.0
    %504 = vmatprep.subr.mxu0 0.0
    %505 = vmatpush1.xpose.msra.mxu0 0.0
    %506 = vmatprep.subr.mxu0 0.0
    %507 = vmatpush1.xpose.msra.mxu0 0.0
    %508 = vmatprep.subr.mxu0 0.0
    %509 = vmatpush1.xpose.msra.mxu0 0.0
    %510 = vmatprep.subr.mxu0 0.0
    %511 = vmatpush1.xpose.msra.mxu0 0.0
    %512 = vmatprep.subr.mxu0 0.0
    %513 = vmatpush1.xpose.msra.mxu0 0.0
    %514 = vmatprep.subr.mxu0 0.0
    %515 = vmatpush1.xpose.msra.mxu0 0.0
    %516 = vmatprep.subr.mxu0 0.0
    %517 = vmatpush1.xpose.msra.mxu0 0.0
    %518 = vmatprep.subr.mxu0 0.0
    %519 = vmatpush1.xpose.msra.mxu0 0.0
    %520 = vmatprep.subr.mxu0 0.0
    %521 = vmatpush1.xpose.msra.mxu0 0.0
    %522 = vmatprep.subr.mxu0 0.0
    %523 = vmatpush1.xpose.msra.mxu0 0.0
    %524 = vmatprep.subr.mxu0 0.0
    %525 = vmatpush1.xpose.msra.mxu0 0.0
    %526 = vmatprep.subr.mxu0 0.0
    %527 = vmatpush1.xpose.msra.mxu0 0.0
    %528 = vmatprep.subr.mxu0 0.0
    %529 = vmatpush1.xpose.msra.mxu0 0.0
    %530 = vmatprep.subr.mxu0 0.0
    %531 = vmatpush1.xpose.msra.mxu0 0.0
    %532 = vmatprep.subr.mxu0 0.0
    %533 = vmatpush1.xpose.msra.mxu0 0.0
    %534 = vmatprep.subr.mxu0 0.0
    %535 = vmatpush1.xpose.msra.mxu0 0.0
    %536 = vmatprep.subr.mxu0 0.0
    %537 = vmatpush1.xpose.msra.mxu0 0.0
    %538 = vmatprep.subr.mxu0 0.0
    %539 = vmatpush1.xpose.msra.mxu0 0.0
    %540 = vmatprep.mubr.f32.mxu0 0.0
    %541 = vmatmul.mubr.f32.gmra.mrb[0].mxu0 %v472
    %v542 = vpop.f32.mrb[0].mxu0
    %v543 = vadd.f32 0.0, %v542
    %v544 = vpop.f32.mrb[0].mxu0
    %545 = vdwg.mxu0
    %v546 = vsel %vm141, %v543, -inf
    %547 = vmax.xlane.f32.xlu0 %v546
    %v548 = vpop.xlane.xlu0 %547
    %v549 = vsub.f32 %v543, %v548
    %v550 = vmul.f32 %v549, 1.442695
    %v551 = vpow.pop %v550
    %v552 = vsel %vm141, %v551, 0.0
    %553 = vadd.xlane.f32.xlu0 %v552
    %v554 = vpop.xlane.xlu0 %553
    %v555 = vrcp.pop %v554
    %v556 = vmul.f32 %v551, %v555
    %557 = vrot.lane.b32.xlu0 %v130, 48
    %v558 = vpop.permute.xlu0 %557
    %v561 = vsel %vm141, %v556, 0
    %563 = vmatprep.subr.mxu0 0.0
    %564 = vmatpush1.msra.mxu0 %v558
    %565 = vmatprep.subr.mxu0 0.0
    %566 = vmatpush1.msra.mxu0 0.0
    %567 = vmatprep.subr.mxu0 0.0
    %568 = vmatpush1.msra.mxu0 0.0
    %569 = vmatprep.subr.mxu0 0.0
    %570 = vmatpush1.msra.mxu0 0.0
    %571 = vmatprep.subr.mxu0 0.0
    %572 = vmatpush1.msra.mxu0 0.0
    %573 = vmatprep.subr.mxu0 0.0
    %574 = vmatpush1.msra.mxu0 0.0
    %575 = vmatprep.subr.mxu0 0.0
    %576 = vmatpush1.msra.mxu0 0.0
    %577 = vmatprep.subr.mxu0 0.0
    %578 = vmatpush1.msra.mxu0 0.0
    %579 = vmatprep.subr.mxu0 0.0
    %580 = vmatpush1.msra.mxu0 0.0
    %581 = vmatprep.subr.mxu0 0.0
    %582 = vmatpush1.msra.mxu0 0.0
    %583 = vmatprep.subr.mxu0 0.0
    %584 = vmatpush1.msra.mxu0 0.0
    %585 = vmatprep.subr.mxu0 0.0
    %586 = vmatpush1.msra.mxu0 0.0
    %587 = vmatprep.subr.mxu0 0.0
    %588 = vmatpush1.msra.mxu0 0.0
    %589 = vmatprep.subr.mxu0 0.0
    %590 = vmatpush1.msra.mxu0 0.0
    %591 = vmatprep.subr.mxu0 0.0
    %592 = vmatpush1.msra.mxu0 0.0
    %593 = vmatprep.subr.mxu0 0.0
    %594 = vmatpush1.msra.mxu0 0.0
    %595 = vmatprep.subr.mxu0 0.0
    %596 = vmatpush1.msra.mxu0 0.0
    %597 = vmatprep.subr.mxu0 0.0
    %598 = vmatpush1.msra.mxu0 0.0
    %599 = vmatprep.subr.mxu0 0.0
    %600 = vmatpush1.msra.mxu0 0.0
    %601 = vmatprep.subr.mxu0 0.0
    %602 = vmatpush1.msra.mxu0 0.0
    %603 = vmatprep.subr.mxu0 0.0
    %604 = vmatpush1.msra.mxu0 0.0
    %605 = vmatprep.subr.mxu0 0.0
    %606 = vmatpush1.msra.mxu0 0.0
    %607 = vmatprep.subr.mxu0 0.0
    %608 = vmatpush1.msra.mxu0 0.0
    %609 = vmatprep.subr.mxu0 0.0
    %610 = vmatpush1.msra.mxu0 0.0
    %611 = vmatprep.subr.mxu0 0.0
    %612 = vmatpush1.msra.mxu0 0.0
    %613 = vmatprep.subr.mxu0 0.0
    %614 = vmatpush1.msra.mxu0 0.0
    %615 = vmatprep.subr.mxu0 0.0
    %616 = vmatpush1.msra.mxu0 0.0
    %617 = vmatprep.subr.mxu0 0.0
    %618 = vmatpush1.msra.mxu0 0.0
    %619 = vmatprep.subr.mxu0 0.0
    %620 = vmatpush1.msra.mxu0 0.0
    %621 = vmatprep.subr.mxu0 0.0
    %622 = vmatpush1.msra.mxu0 0.0
    %623 = vmatprep.subr.mxu0 0.0
    %624 = vmatpush1.msra.mxu0 0.0
    %625 = vmatprep.subr.mxu0 0.0
    %626 = vmatpush1.msra.mxu0 0.0
    %627 = vmatprep.mubr.f32.mxu0 0.0
    %628 = vmatmul.mubr.f32.gmra.mrb[0].mxu0 %v561
    %v629 = vpop.f32.mrb[0].mxu0
    %v630 = vadd.f32 0.0, %v629
    %v631 = vpop.f32.mrb[0].mxu0
    %632 = vdwg.mxu0
    %633 = vrot.lane.b32.xlu0 %v130, 104
    %v634 = vpop.permute.xlu0 %633
    %635 = vrot.lane.b32.xlu0 %v130, 72
    %v636 = vpop.permute.xlu0 %635
    %v637 = vsel %vm141, %v634, 0
    %v639 = vsel %vm141, %v636, 0
    %641 = vmatprep.subr.mxu0 0.0
    %642 = vmatpush1.xpose.msra.mxu0 %v639
    %643 = vmatprep.subr.mxu0 0.0
    %644 = vmatpush1.xpose.msra.mxu0 0.0
    %645 = vmatprep.subr.mxu0 0.0
    %646 = vmatpush1.xpose.msra.mxu0 0.0
    %647 = vmatprep.subr.mxu0 0.0
    %648 = vmatpush1.xpose.msra.mxu0 0.0
    %649 = vmatprep.subr.mxu0 0.0
    %650 = vmatpush1.xpose.msra.mxu0 0.0
    %651 = vmatprep.subr.mxu0 0.0
    %652 = vmatpush1.xpose.msra.mxu0 0.0
    %653 = vmatprep.subr.mxu0 0.0
    %654 = vmatpush1.xpose.msra.mxu0 0.0
    %655 = vmatprep.subr.mxu0 0.0
    %656 = vmatpush1.xpose.msra.mxu0 0.0
    %657 = vmatprep.subr.mxu0 0.0
    %658 = vmatpush1.xpose.msra.mxu0 0.0
    %659 = vmatprep.subr.mxu0 0.0
    %660 = vmatpush1.xpose.msra.mxu0 0.0
    %661 = vmatprep.subr.mxu0 0.0
    %662 = vmatpush1.xpose.msra.mxu0 0.0
    %663 = vmatprep.subr.mxu0 0.0
    %664 = vmatpush1.xpose.msra.mxu0 0.0
    %665 = vmatprep.subr.mxu0 0.0
    %666 = vmatpush1.xpose.msra.mxu0 0.0
    %667 = vmatprep.subr.mxu0 0.0
    %668 = vmatpush1.xpose.msra.mxu0 0.0
    %669 = vmatprep.subr.mxu0 0.0
    %670 = vmatpush1.xpose.msra.mxu0 0.0
    %671 = vmatprep.subr.mxu0 0.0
    %672 = vmatpush1.xpose.msra.mxu0 0.0
    %673 = vmatprep.subr.mxu0 0.0
    %674 = vmatpush1.xpose.msra.mxu0 0.0
    %675 = vmatprep.subr.mxu0 0.0
    %676 = vmatpush1.xpose.msra.mxu0 0.0
    %677 = vmatprep.subr.mxu0 0.0
    %678 = vmatpush1.xpose.msra.mxu0 0.0
    %679 = vmatprep.subr.mxu0 0.0
    %680 = vmatpush1.xpose.msra.mxu0 0.0
    %681 = vmatprep.subr.mxu0 0.0
    %682 = vmatpush1.xpose.msra.mxu0 0.0
    %683 = vmatprep.subr.mxu0 0.0
    %684 = vmatpush1.xpose.msra.mxu0 0.0
    %685 = vmatprep.subr.mxu0 0.0
    %686 = vmatpush1.xpose.msra.mxu0 0.0
    %687 = vmatprep.subr.mxu0 0.0
    %688 = vmatpush1.xpose.msra.mxu0 0.0
    %689 = vmatprep.subr.mxu0 0.0
    %690 = vmatpush1.xpose.msra.mxu0 0.0
    %691 = vmatprep.subr.mxu0 0.0
    %692 = vmatpush1.xpose.msra.mxu0 0.0
    %693 = vmatprep.subr.mxu0 0.0
    %694 = vmatpush1.xpose.msra.mxu0 0.0
    %695 = vmatprep.subr.mxu0 0.0
    %696 = vmatpush1.xpose.msra.mxu0 0.0
    %697 = vmatprep.subr.mxu0 0.0
    %698 = vmatpush1.xpose.msra.mxu0 0.0
    %699 = vmatprep.subr.mxu0 0.0
    %700 = vmatpush1.xpose.msra.mxu0 0.0
    %701 = vmatprep.subr.mxu0 0.0
    %702 = vmatpush1.xpose.msra.mxu0 0.0
    %703 = vmatprep.subr.mxu0 0.0
    %704 = vmatpush1.xpose.msra.mxu0 0.0
    %705 = vmatprep.mubr.f32.mxu0 0.0
    %706 = vmatmul.mubr.f32.gmra.mrb[0].mxu0 %v637
    %v707 = vpop.f32.mrb[0].mxu0
    %v708 = vadd.f32 0.0, %v707
    %v709 = vpop.f32.mrb[0].mxu0
    %710 = vdwg.mxu0
    %v711 = vsel %vm141, %v708, -inf
    %712 = vmax.xlane.f32.xlu0 %v711
    %v713 = vpop.xlane.xlu0 %712
    %v714 = vsub.f32 %v708, %v713
    %v715 = vmul.f32 %v714, 1.442695
    %v716 = vpow.pop %v715
    %v717 = vsel %vm141, %v716, 0.0
    %718 = vadd.xlane.f32.xlu0 %v717
    %v719 = vpop.xlane.xlu0 %718
    %v720 = vrcp.pop %v719
    %v721 = vmul.f32 %v716, %v720
    %722 = vrot.lane.b32.xlu0 %v130, 40
    %v723 = vpop.permute.xlu0 %722
    %v726 = vsel %vm141, %v721, 0
    %728 = vmatprep.subr.mxu0 0.0
    %729 = vmatpush1.msra.mxu0 %v723
    %730 = vmatprep.subr.mxu0 0.0
    %731 = vmatpush1.msra.mxu0 0.0
    %732 = vmatprep.subr.mxu0 0.0
    %733 = vmatpush1.msra.mxu0 0.0
    %734 = vmatprep.subr.mxu0 0.0
    %735 = vmatpush1.msra.mxu0 0.0
    %736 = vmatprep.subr.mxu0 0.0
    %737 = vmatpush1.msra.mxu0 0.0
    %738 = vmatprep.subr.mxu0 0.0
    %739 = vmatpush1.msra.mxu0 0.0
    %740 = vmatprep.subr.mxu0 0.0
    %741 = vmatpush1.msra.mxu0 0.0
    %742 = vmatprep.subr.mxu0 0.0
    %743 = vmatpush1.msra.mxu0 0.0
    %744 = vmatprep.subr.mxu0 0.0
    %745 = vmatpush1.msra.mxu0 0.0
    %746 = vmatprep.subr.mxu0 0.0
    %747 = vmatpush1.msra.mxu0 0.0
    %748 = vmatprep.subr.mxu0 0.0
    %749 = vmatpush1.msra.mxu0 0.0
    %750 = vmatprep.subr.mxu0 0.0
    %751 = vmatpush1.msra.mxu0 0.0
    %752 = vmatprep.subr.mxu0 0.0
    %753 = vmatpush1.msra.mxu0 0.0
    %754 = vmatprep.subr.mxu0 0.0
    %755 = vmatpush1.msra.mxu0 0.0
    %756 = vmatprep.subr.mxu0 0.0
    %757 = vmatpush1.msra.mxu0 0.0
    %758 = vmatprep.subr.mxu0 0.0
    %759 = vmatpush1.msra.mxu0 0.0
    %760 = vmatprep.subr.mxu0 0.0
    %761 = vmatpush1.msra.mxu0 0.0
    %762 = vmatprep.subr.mxu0 0.0
    %763 = vmatpush1.msra.mxu0 0.0
    %764 = vmatprep.subr.mxu0 0.0
    %765 = vmatpush1.msra.mxu0 0.0
    %766 = vmatprep.subr.mxu0 0.0
    %767 = vmatpush1.msra.mxu0 0.0
    %768 = vmatprep.subr.mxu0 0.0
    %769 = vmatpush1.msra.mxu0 0.0
    %770 = vmatprep.subr.mxu0 0.0
    %771 = vmatpush1.msra.mxu0 0.0
    %772 = vmatprep.subr.mxu0 0.0
    %773 = vmatpush1.msra.mxu0 0.0
    %774 = vmatprep.subr.mxu0 0.0
    %775 = vmatpush1.msra.mxu0 0.0
    %776 = vmatprep.subr.mxu0 0.0
    %777 = vmatpush1.msra.mxu0 0.0
    %778 = vmatprep.subr.mxu0 0.0
    %779 = vmatpush1.msra.mxu0 0.0
    %780 = vmatprep.subr.mxu0 0.0
    %781 = vmatpush1.msra.mxu0 0.0
    %782 = vmatprep.subr.mxu0 0.0
    %783 = vmatpush1.msra.mxu0 0.0
    %784 = vmatprep.subr.mxu0 0.0
    %785 = vmatpush1.msra.mxu0 0.0
    %786 = vmatprep.subr.mxu0 0.0
    %787 = vmatpush1.msra.mxu0 0.0
    %788 = vmatprep.subr.mxu0 0.0
    %789 = vmatpush1.msra.mxu0 0.0
    %790 = vmatprep.subr.mxu0 0.0
    %791 = vmatpush1.msra.mxu0 0.0
    %792 = vmatprep.mubr.f32.mxu0 0.0
    %793 = vmatmul.mubr.f32.gmra.mrb[0].mxu0 %v726
    %v794 = vpop.f32.mrb[0].mxu0
    %v795 = vadd.f32 0.0, %v794
    %v796 = vpop.f32.mrb[0].mxu0
    %797 = vdwg.mxu0
    %799 = vrot.lane.b32.xlu0 %v465, 8
    %v800 = vpop.permute.xlu0 %799
    %803 = vrot.lane.b32.xlu0 %v630, 16
    %v804 = vpop.permute.xlu0 %803
    %807 = vrot.lane.b32.xlu0 %v795, 24
    %v808 = vpop.permute.xlu0 %807
    %v810 = vsel %vm141, %v300, %v800
    %vm811 = vcmask 130048
    %v812 = vsel %vm811, %v810, %v804
    %vm813 = vcmask 195584
    %v814 = vsel %vm813, %v812, %v808
    %816 = vrot.lane.b32.xlu0 %v135, 96
    %v817 = vpop.permute.xlu0 %816
    %v818 = vsel %vm141, %v135, 0
    %v820 = vsel %vm141, %v817, 0
    %822 = vmatprep.subr.mxu0 0.0
    %823 = vmatpush1.xpose.msra.mxu0 %v820
    %824 = vmatprep.subr.mxu0 0.0
    %825 = vmatpush1.xpose.msra.mxu0 0.0
    %826 = vmatprep.subr.mxu0 0.0
    %827 = vmatpush1.xpose.msra.mxu0 0.0
    %828 = vmatprep.subr.mxu0 0.0
    %829 = vmatpush1.xpose.msra.mxu0 0.0
    %830 = vmatprep.subr.mxu0 0.0
    %831 = vmatpush1.xpose.msra.mxu0 0.0
    %832 = vmatprep.subr.mxu0 0.0
    %833 = vmatpush1.xpose.msra.mxu0 0.0
    %834 = vmatprep.subr.mxu0 0.0
    %835 = vmatpush1.xpose.msra.mxu0 0.0
    %836 = vmatprep.subr.mxu0 0.0
    %837 = vmatpush1.xpose.msra.mxu0 0.0
    %838 = vmatprep.subr.mxu0 0.0
    %839 = vmatpush1.xpose.msra.mxu0 0.0
    %840 = vmatprep.subr.mxu0 0.0
    %841 = vmatpush1.xpose.msra.mxu0 0.0
    %842 = vmatprep.subr.mxu0 0.0
    %843 = vmatpush1.xpose.msra.mxu0 0.0
    %844 = vmatprep.subr.mxu0 0.0
    %845 = vmatpush1.xpose.msra.mxu0 0.0
    %846 = vmatprep.subr.mxu0 0.0
    %847 = vmatpush1.xpose.msra.mxu0 0.0
    %848 = vmatprep.subr.mxu0 0.0
    %849 = vmatpush1.xpose.msra.mxu0 0.0
    %850 = vmatprep.subr.mxu0 0.0
    %851 = vmatpush1.xpose.msra.mxu0 0.0
    %852 = vmatprep.subr.mxu0 0.0
    %853 = vmatpush1.xpose.msra.mxu0 0.0
    %854 = vmatprep.subr.mxu0 0.0
    %855 = vmatpush1.xpose.msra.mxu0 0.0
    %856 = vmatprep.subr.mxu0 0.0
    %857 = vmatpush1.xpose.msra.mxu0 0.0
    %858 = vmatprep.subr.mxu0 0.0
    %859 = vmatpush1.xpose.msra.mxu0 0.0
    %860 = vmatprep.subr.mxu0 0.0
    %861 = vmatpush1.xpose.msra.mxu0 0.0
    %862 = vmatprep.subr.mxu0 0.0
    %863 = vmatpush1.xpose.msra.mxu0 0.0
    %864 = vmatprep.subr.mxu0 0.0
    %865 = vmatpush1.xpose.msra.mxu0 0.0
    %866 = vmatprep.subr.mxu0 0.0
    %867 = vmatpush1.xpose.msra.mxu0 0.0
    %868 = vmatprep.subr.mxu0 0.0
    %869 = vmatpush1.xpose.msra.mxu0 0.0
    %870 = vmatprep.subr.mxu0 0.0
    %871 = vmatpush1.xpose.msra.mxu0 0.0
    %872 = vmatprep.subr.mxu0 0.0
    %873 = vmatpush1.xpose.msra.mxu0 0.0
    %874 = vmatprep.subr.mxu0 0.0
    %875 = vmatpush1.xpose.msra.mxu0 0.0
    %876 = vmatprep.subr.mxu0 0.0
    %877 = vmatpush1.xpose.msra.mxu0 0.0
    %878 = vmatprep.subr.mxu0 0.0
    %879 = vmatpush1.xpose.msra.mxu0 0.0
    %880 = vmatprep.subr.mxu0 0.0
    %881 = vmatpush1.xpose.msra.mxu0 0.0
    %882 = vmatprep.subr.mxu0 0.0
    %883 = vmatpush1.xpose.msra.mxu0 0.0
    %884 = vmatprep.subr.mxu0 0.0
    %885 = vmatpush1.xpose.msra.mxu0 0.0
    %886 = vmatprep.mubr.f32.mxu0 0.0
    %887 = vmatmul.mubr.f32.gmra.mrb[0].mxu0 %v818
    %v888 = vpop.f32.mrb[0].mxu0
    %v889 = vadd.f32 0.0, %v888
    %v890 = vpop.f32.mrb[0].mxu0
    %891 = vdwg.mxu0
    %v892 = vsel %vm141, %v889, -inf
    %893 = vmax.xlane.f32.xlu0 %v892
    %v894 = vpop.xlane.xlu0 %893
    %v895 = vsub.f32 %v889, %v894
    %v896 = vmul.f32 %v895, 1.442695
    %v897 = vpow.pop %v896
    %v898 = vsel %vm141, %v897, 0.0
    %899 = vadd.xlane.f32.xlu0 %v898
    %v900 = vpop.xlane.xlu0 %899
    %v901 = vrcp.pop %v900
    %v902 = vmul.f32 %v897, %v901
    %903 = vrot.lane.b32.xlu0 %v135, 64
    %v904 = vpop.permute.xlu0 %903
    %v907 = vsel %vm141, %v902, 0
    %909 = vmatprep.subr.mxu0 0.0
    %910 = vmatpush1.msra.mxu0 %v904
    %911 = vmatprep.subr.mxu0 0.0
    %912 = vmatpush1.msra.mxu0 0.0
    %913 = vmatprep.subr.mxu0 0.0
    %914 = vmatpush1.msra.mxu0 0.0
    %915 = vmatprep.subr.mxu0 0.0
    %916 = vmatpush1.msra.mxu0 0.0
    %917 = vmatprep.subr.mxu0 0.0
    %918 = vmatpush1.msra.mxu0 0.0
    %919 = vmatprep.subr.mxu0 0.0
    %920 = vmatpush1.msra.mxu0 0.0
    %921 = vmatprep.subr.mxu0 0.0
    %922 = vmatpush1.msra.mxu0 0.0
    %923 = vmatprep.subr.mxu0 0.0
    %924 = vmatpush1.msra.mxu0 0.0
    %925 = vmatprep.subr.mxu0 0.0
    %926 = vmatpush1.msra.mxu0 0.0
    %927 = vmatprep.subr.mxu0 0.0
    %928 = vmatpush1.msra.mxu0 0.0
    %929 = vmatprep.subr.mxu0 0.0
    %930 = vmatpush1.msra.mxu0 0.0
    %931 = vmatprep.subr.mxu0 0.0
    %932 = vmatpush1.msra.mxu0 0.0
    %933 = vmatprep.subr.mxu0 0.0
    %934 = vmatpush1.msra.mxu0 0.0
    %935 = vmatprep.subr.mxu0 0.0
    %936 = vmatpush1.msra.mxu0 0.0
    %937 = vmatprep.subr.mxu0 0.0
    %938 = vmatpush1.msra.mxu0 0.0
    %939 = vmatprep.subr.mxu0 0.0
    %940 = vmatpush1.msra.mxu0 0.0
    %941 = vmatprep.subr.mxu0 0.0
    %942 = vmatpush1.msra.mxu0 0.0
    %943 = vmatprep.subr.mxu0 0.0
    %944 = vmatpush1.msra.mxu0 0.0
    %945 = vmatprep.subr.mxu0 0.0
    %946 = vmatpush1.msra.mxu0 0.0
    %947 = vmatprep.subr.mxu0 0.0
    %948 = vmatpush1.msra.mxu0 0.0
    %949 = vmatprep.subr.mxu0 0.0
    %950 = vmatpush1.msra.mxu0 0.0
    %951 = vmatprep.subr.mxu0 0.0
    %952 = vmatpush1.msra.mxu0 0.0
    %953 = vmatprep.subr.mxu0 0.0
    %954 = vmatpush1.msra.mxu0 0.0
    %955 = vmatprep.subr.mxu0 0.0
    %956 = vmatpush1.msra.mxu0 0.0
    %957 = vmatprep.subr.mxu0 0.0
    %958 = vmatpush1.msra.mxu0 0.0
    %959 = vmatprep.subr.mxu0 0.0
    %960 = vmatpush1.msra.mxu0 0.0
    %961 = vmatprep.subr.mxu0 0.0
    %962 = vmatpush1.msra.mxu0 0.0
    %963 = vmatprep.subr.mxu0 0.0
    %964 = vmatpush1.msra.mxu0 0.0
    %965 = vmatprep.subr.mxu0 0.0
    %966 = vmatpush1.msra.mxu0 0.0
    %967 = vmatprep.subr.mxu0 0.0
    %968 = vmatpush1.msra.mxu0 0.0
    %969 = vmatprep.subr.mxu0 0.0
    %970 = vmatpush1.msra.mxu0 0.0
    %971 = vmatprep.subr.mxu0 0.0
    %972 = vmatpush1.msra.mxu0 0.0
    %973 = vmatprep.mubr.f32.mxu0 0.0
    %974 = vmatmul.mubr.f32.gmra.mrb[0].mxu0 %v907
    %v975 = vpop.f32.mrb[0].mxu0
    %v976 = vadd.f32 0.0, %v975
    %v977 = vpop.f32.mrb[0].mxu0
    %978 = vdwg.mxu0
    %979 = vrot.lane.b32.xlu0 %v135, 120
    %v980 = vpop.permute.xlu0 %979
    %981 = vrot.lane.b32.xlu0 %v135, 88
    %v982 = vpop.permute.xlu0 %981
    %v983 = vsel %vm141, %v980, 0
    %v985 = vsel %vm141, %v982, 0
    %987 = vmatprep.subr.mxu0 0.0
    %988 = vmatpush1.xpose.msra.mxu0 %v985
    %989 = vmatprep.subr.mxu0 0.0
    %990 = vmatpush1.xpose.msra.mxu0 0.0
    %991 = vmatprep.subr.mxu0 0.0
    %992 = vmatpush1.xpose.msra.mxu0 0.0
    %993 = vmatprep.subr.mxu0 0.0
    %994 = vmatpush1.xpose.msra.mxu0 0.0
    %995 = vmatprep.subr.mxu0 0.0
    %996 = vmatpush1.xpose.msra.mxu0 0.0
    %997 = vmatprep.subr.mxu0 0.0
    %998 = vmatpush1.xpose.msra.mxu0 0.0
    %999 = vmatprep.subr.mxu0 0.0
    %1000 = vmatpush1.xpose.msra.mxu0 0.0
    %1001 = vmatprep.subr.mxu0 0.0
    %1002 = vmatpush1.xpose.msra.mxu0 0.0
    %1003 = vmatprep.subr.mxu0 0.0
    %1004 = vmatpush1.xpose.msra.mxu0 0.0
    %1005 = vmatprep.subr.mxu0 0.0
    %1006 = vmatpush1.xpose.msra.mxu0 0.0
    %1007 = vmatprep.subr.mxu0 0.0
    %1008 = vmatpush1.xpose.msra.mxu0 0.0
    %1009 = vmatprep.subr.mxu0 0.0
    %1010 = vmatpush1.xpose.msra.mxu0 0.0
    %1011 = vmatprep.subr.mxu0 0.0
    %1012 = vmatpush1.xpose.msra.mxu0 0.0
    %1013 = vmatprep.subr.mxu0 0.0
    %1014 = vmatpush1.xpose.msra.mxu0 0.0
    %1015 = vmatprep.subr.mxu0 0.0
    %1016 = vmatpush1.xpose.msra.mxu0 0.0
    %1017 = vmatprep.subr.mxu0 0.0
    %1018 = vmatpush1.xpose.msra.mxu0 0.0
    %1019 = vmatprep.subr.mxu0 0.0
    %1020 = vmatpush1.xpose.msra.mxu0 0.0
    %1021 = vmatprep.subr.mxu0 0.0
    %1022 = vmatpush1.xpose.msra.mxu0 0.0
    %1023 = vmatprep.subr.mxu0 0.0
    %1024 = vmatpush1.xpose.msra.mxu0 0.0
    %1025 = vmatprep.subr.mxu0 0.0
    %1026 = vmatpush1.xpose.msra.mxu0 0.0
    %1027 = vmatprep.subr.mxu0 0.0
    %1028 = vmatpush1.xpose.msra.mxu0 0.0
    %1029 = vmatprep.subr.mxu0 0.0
    %1030 = vmatpush1.xpose.msra.mxu0 0.0
    %1031 = vmatprep.subr.mxu0 0.0
    %1032 = vmatpush1.xpose.msra.mxu0 0.0
    %1033 = vmatprep.subr.mxu0 0.0
    %1034 = vmatpush1.xpose.msra.mxu0 0.0
    %1035 = vmatprep.subr.mxu0 0.0
    %1036 = vmatpush1.xpose.msra.mxu0 0.0
    %1037 = vmatprep.subr.mxu0 0.0
    %1038 = vmatpush1.xpose.msra.mxu0 0.0
    %1039 = vmatprep.subr.mxu0 0.0
    %1040 = vmatpush1.xpose.msra.mxu0 0.0
    %1041 = vmatprep.subr.mxu0 0.0
    %1042 = vmatpush1.xpose.msra.mxu0 0.0
    %1043 = vmatprep.subr.mxu0 0.0
    %1044 = vmatpush1.xpose.msra.mxu0 0.0
    %1045 = vmatprep.subr.mxu0 0.0
    %1046 = vmatpush1.xpose.msra.mxu0 0.0
    %1047 = vmatprep.subr.mxu0 0.0
    %1048 = vmatpush1.xpose.msra.mxu0 0.0
    %1049 = vmatprep.subr.mxu0 0.0
    %1050 = vmatpush1.xpose.msra.mxu0 0.0
    %1051 = vmatprep.mubr.f32.mxu0 0.0
    %1052 = vmatmul.mubr.f32.gmra.mrb[0].mxu0 %v983
    %v1053 = vpop.f32.mrb[0].mxu0
    %v1054 = vadd.f32 0.0, %v1053
    %v1055 = vpop.f32.mrb[0].mxu0
    %1056 = vdwg.mxu0
    %v1057 = vsel %vm141, %v1054, -inf
    %1058 = vmax.xlane.f32.xlu0 %v1057
    %v1059 = vpop.xlane.xlu0 %1058
    %v1060 = vsub.f32 %v1054, %v1059
    %v1061 = vmul.f32 %v1060, 1.442695
    %v1062 = vpow.pop %v1061
    %v1063 = vsel %vm141, %v1062, 0.0
    %1064 = vadd.xlane.f32.xlu0 %v1063
    %v1065 = vpop.xlane.xlu0 %1064
    %v1066 = vrcp.pop %v1065
    %v1067 = vmul.f32 %v1062, %v1066
    %1068 = vrot.lane.b32.xlu0 %v135, 56
    %v1069 = vpop.permute.xlu0 %1068
    %v1072 = vsel %vm141, %v1067, 0
    %1074 = vmatprep.subr.mxu0 0.0
    %1075 = vmatpush1.msra.mxu0 %v1069
    %1076 = vmatprep.subr.mxu0 0.0
    %1077 = vmatpush1.msra.mxu0 0.0
    %1078 = vmatprep.subr.mxu0 0.0
    %1079 = vmatpush1.msra.mxu0 0.0
    %1080 = vmatprep.subr.mxu0 0.0
    %1081 = vmatpush1.msra.mxu0 0.0
    %1082 = vmatprep.subr.mxu0 0.0
    %1083 = vmatpush1.msra.mxu0 0.0
    %1084 = vmatprep.subr.mxu0 0.0
    %1085 = vmatpush1.msra.mxu0 0.0
    %1086 = vmatprep.subr.mxu0 0.0
    %1087 = vmatpush1.msra.mxu0 0.0
    %1088 = vmatprep.subr.mxu0 0.0
    %1089 = vmatpush1.msra.mxu0 0.0
    %1090 = vmatprep.subr.mxu0 0.0
    %1091 = vmatpush1.msra.mxu0 0.0
    %1092 = vmatprep.subr.mxu0 0.0
    %1093 = vmatpush1.msra.mxu0 0.0
    %1094 = vmatprep.subr.mxu0 0.0
    %1095 = vmatpush1.msra.mxu0 0.0
    %1096 = vmatprep.subr.mxu0 0.0
    %1097 = vmatpush1.msra.mxu0 0.0
    %1098 = vmatprep.subr.mxu0 0.0
    %1099 = vmatpush1.msra.mxu0 0.0
    %1100 = vmatprep.subr.mxu0 0.0
    %1101 = vmatpush1.msra.mxu0 0.0
    %1102 = vmatprep.subr.mxu0 0.0
    %1103 = vmatpush1.msra.mxu0 0.0
    %1104 = vmatprep.subr.mxu0 0.0
    %1105 = vmatpush1.msra.mxu0 0.0
    %1106 = vmatprep.subr.mxu0 0.0
    %1107 = vmatpush1.msra.mxu0 0.0
    %1108 = vmatprep.subr.mxu0 0.0
    %1109 = vmatpush1.msra.mxu0 0.0
    %1110 = vmatprep.subr.mxu0 0.0
    %1111 = vmatpush1.msra.mxu0 0.0
    %1112 = vmatprep.subr.mxu0 0.0
    %1113 = vmatpush1.msra.mxu0 0.0
    %1114 = vmatprep.subr.mxu0 0.0
    %1115 = vmatpush1.msra.mxu0 0.0
    %1116 = vmatprep.subr.mxu0 0.0
    %1117 = vmatpush1.msra.mxu0 0.0
    %1118 = vmatprep.subr.mxu0 0.0
    %1119 = vmatpush1.msra.mxu0 0.0
    %1120 = vmatprep.subr.mxu0 0.0
    %1121 = vmatpush1.msra.mxu0 0.0
    %1122 = vmatprep.subr.mxu0 0.0
    %1123 = vmatpush1.msra.mxu0 0.0
    %1124 = vmatprep.subr.mxu0 0.0
    %1125 = vmatpush1.msra.mxu0 0.0
    %1126 = vmatprep.subr.mxu0 0.0
    %1127 = vmatpush1.msra.mxu0 0.0
    %1128 = vmatprep.subr.mxu0 0.0
    %1129 = vmatpush1.msra.mxu0 0.0
    %1130 = vmatprep.subr.mxu0 0.0
    %1131 = vmatpush1.msra.mxu0 0.0
    %1132 = vmatprep.subr.mxu0 0.0
    %1133 = vmatpush1.msra.mxu0 0.0
    %1134 = vmatprep.subr.mxu0 0.0
    %1135 = vmatpush1.msra.mxu0 0.0
    %1136 = vmatprep.subr.mxu0 0.0
    %1137 = vmatpush1.msra.mxu0 0.0
    %1138 = vmatprep.mubr.f32.mxu0 0.0
    %1139 = vmatmul.mubr.f32.gmra.mrb[0].mxu0 %v1072
    %v1140 = vpop.f32.mrb[0].mxu0
    %v1141 = vadd.f32 0.0, %v1140
    %v1142 = vpop.f32.mrb[0].mxu0
    %1143 = vdwg.mxu0
    %1144 = vrot.lane.b32.xlu0 %v135, 112
    %v1145 = vpop.permute.xlu0 %1144
    %1146 = vrot.lane.b32.xlu0 %v135, 80
    %v1147 = vpop.permute.xlu0 %1146
    %v1148 = vsel %vm141, %v1145, 0
    %v1150 = vsel %vm141, %v1147, 0
    %1152 = vmatprep.subr.mxu0 0.0
    %1153 = vmatpush1.xpose.msra.mxu0 %v1150
    %1154 = vmatprep.subr.mxu0 0.0
    %1155 = vmatpush1.xpose.msra.mxu0 0.0
    %1156 = vmatprep.subr.mxu0 0.0
    %1157 = vmatpush1.xpose.msra.mxu0 0.0
    %1158 = vmatprep.subr.mxu0 0.0
    %1159 = vmatpush1.xpose.msra.mxu0 0.0
    %1160 = vmatprep.subr.mxu0 0.0
    %1161 = vmatpush1.xpose.msra.mxu0 0.0
    %1162 = vmatprep.subr.mxu0 0.0
    %1163 = vmatpush1.xpose.msra.mxu0 0.0
    %1164 = vmatprep.subr.mxu0 0.0
    %1165 = vmatpush1.xpose.msra.mxu0 0.0
    %1166 = vmatprep.subr.mxu0 0.0
    %1167 = vmatpush1.xpose.msra.mxu0 0.0
    %1168 = vmatprep.subr.mxu0 0.0
    %1169 = vmatpush1.xpose.msra.mxu0 0.0
    %1170 = vmatprep.subr.mxu0 0.0
    %1171 = vmatpush1.xpose.msra.mxu0 0.0
    %1172 = vmatprep.subr.mxu0 0.0
    %1173 = vmatpush1.xpose.msra.mxu0 0.0
    %1174 = vmatprep.subr.mxu0 0.0
    %1175 = vmatpush1.xpose.msra.mxu0 0.0
    %1176 = vmatprep.subr.mxu0 0.0
    %1177 = vmatpush1.xpose.msra.mxu0 0.0
    %1178 = vmatprep.subr.mxu0 0.0
    %1179 = vmatpush1.xpose.msra.mxu0 0.0
    %1180 = vmatprep.subr.mxu0 0.0
    %1181 = vmatpush1.xpose.msra.mxu0 0.0
    %1182 = vmatprep.subr.mxu0 0.0
    %1183 = vmatpush1.xpose.msra.mxu0 0.0
    %1184 = vmatprep.subr.mxu0 0.0
    %1185 = vmatpush1.xpose.msra.mxu0 0.0
    %1186 = vmatprep.subr.mxu0 0.0
    %1187 = vmatpush1.xpose.msra.mxu0 0.0
    %1188 = vmatprep.subr.mxu0 0.0
    %1189 = vmatpush1.xpose.msra.mxu0 0.0
    %1190 = vmatprep.subr.mxu0 0.0
    %1191 = vmatpush1.xpose.msra.mxu0 0.0
    %1192 = vmatprep.subr.mxu0 0.0
    %1193 = vmatpush1.xpose.msra.mxu0 0.0
    %1194 = vmatprep.subr.mxu0 0.0
    %1195 = vmatpush1.xpose.msra.mxu0 0.0
    %1196 = vmatprep.subr.mxu0 0.0
    %1197 = vmatpush1.xpose.msra.mxu0 0.0
    %1198 = vmatprep.subr.mxu0 0.0
    %1199 = vmatpush1.xpose.msra.mxu0 0.0
    %1200 = vmatprep.subr.mxu0 0.0
    %1201 = vmatpush1.xpose.msra.mxu0 0.0
    %1202 = vmatprep.subr.mxu0 0.0
    %1203 = vmatpush1.xpose.msra.mxu0 0.0
    %1204 = vmatprep.subr.mxu0 0.0
    %1205 = vmatpush1.xpose.msra.mxu0 0.0
    %1206 = vmatprep.subr.mxu0 0.0
    %1207 = vmatpush1.xpose.msra.mxu0 0.0
    %1208 = vmatprep.subr.mxu0 0.0
    %1209 = vmatpush1.xpose.msra.mxu0 0.0
    %1210 = vmatprep.subr.mxu0 0.0
    %1211 = vmatpush1.xpose.msra.mxu0 0.0
    %1212 = vmatprep.subr.mxu0 0.0
    %1213 = vmatpush1.xpose.msra.mxu0 0.0
    %1214 = vmatprep.subr.mxu0 0.0
    %1215 = vmatpush1.xpose.msra.mxu0 0.0
    %1216 = vmatprep.mubr.f32.mxu0 0.0
    %1217 = vmatmul.mubr.f32.gmra.mrb[0].mxu0 %v1148
    %v1218 = vpop.f32.mrb[0].mxu0
    %v1219 = vadd.f32 0.0, %v1218
    %v1220 = vpop.f32.mrb[0].mxu0
    %1221 = vdwg.mxu0
    %v1222 = vsel %vm141, %v1219, -inf
    %1223 = vmax.xlane.f32.xlu0 %v1222
    %v1224 = vpop.xlane.xlu0 %1223
    %v1225 = vsub.f32 %v1219, %v1224
    %v1226 = vmul.f32 %v1225, 1.442695
    %v1227 = vpow.pop %v1226
    %v1228 = vsel %vm141, %v1227, 0.0
    %1229 = vadd.xlane.f32.xlu0 %v1228
    %v1230 = vpop.xlane.xlu0 %1229
    %v1231 = vrcp.pop %v1230
    %v1232 = vmul.f32 %v1227, %v1231
    %1233 = vrot.lane.b32.xlu0 %v135, 48
    %v1234 = vpop.permute.xlu0 %1233
    %v1237 = vsel %vm141, %v1232, 0
    %1239 = vmatprep.subr.mxu0 0.0
    %1240 = vmatpush1.msra.mxu0 %v1234
    %1241 = vmatprep.subr.mxu0 0.0
    %1242 = vmatpush1.msra.mxu0 0.0
    %1243 = vmatprep.subr.mxu0 0.0
    %1244 = vmatpush1.msra.mxu0 0.0
    %1245 = vmatprep.subr.mxu0 0.0
    %1246 = vmatpush1.msra.mxu0 0.0
    %1247 = vmatprep.subr.mxu0 0.0
    %1248 = vmatpush1.msra.mxu0 0.0
    %1249 = vmatprep.subr.mxu0 0.0
    %1250 = vmatpush1.msra.mxu0 0.0
    %1251 = vmatprep.subr.mxu0 0.0
    %1252 = vmatpush1.msra.mxu0 0.0
    %1253 = vmatprep.subr.mxu0 0.0
    %1254 = vmatpush1.msra.mxu0 0.0
    %1255 = vmatprep.subr.mxu0 0.0
    %1256 = vmatpush1.msra.mxu0 0.0
    %1257 = vmatprep.subr.mxu0 0.0
    %1258 = vmatpush1.msra.mxu0 0.0
    %1259 = vmatprep.subr.mxu0 0.0
    %1260 = vmatpush1.msra.mxu0 0.0
    %1261 = vmatprep.subr.mxu0 0.0
    %1262 = vmatpush1.msra.mxu0 0.0
    %1263 = vmatprep.subr.mxu0 0.0
    %1264 = vmatpush1.msra.mxu0 0.0
    %1265 = vmatprep.subr.mxu0 0.0
    %1266 = vmatpush1.msra.mxu0 0.0
    %1267 = vmatprep.subr.mxu0 0.0
    %1268 = vmatpush1.msra.mxu0 0.0
    %1269 = vmatprep.subr.mxu0 0.0
    %1270 = vmatpush1.msra.mxu0 0.0
    %1271 = vmatprep.subr.mxu0 0.0
    %1272 = vmatpush1.msra.mxu0 0.0
    %1273 = vmatprep.subr.mxu0 0.0
    %1274 = vmatpush1.msra.mxu0 0.0
    %1275 = vmatprep.subr.mxu0 0.0
    %1276 = vmatpush1.msra.mxu0 0.0
    %1277 = vmatprep.subr.mxu0 0.0
    %1278 = vmatpush1.msra.mxu0 0.0
    %1279 = vmatprep.subr.mxu0 0.0
    %1280 = vmatpush1.msra.mxu0 0.0
    %1281 = vmatprep.subr.mxu0 0.0
    %1282 = vmatpush1.msra.mxu0 0.0
    %1283 = vmatprep.subr.mxu0 0.0
    %1284 = vmatpush1.msra.mxu0 0.0
    %1285 = vmatprep.subr.mxu0 0.0
    %1286 = vmatpush1.msra.mxu0 0.0
    %1287 = vmatprep.subr.mxu0 0.0
    %1288 = vmatpush1.msra.mxu0 0.0
    %1289 = vmatprep.subr.mxu0 0.0
    %1290 = vmatpush1.msra.mxu0 0.0
    %1291 = vmatprep.subr.mxu0 0.0
    %1292 = vmatpush1.msra.mxu0 0.0
    %1293 = vmatprep.subr.mxu0 0.0
    %1294 = vmatpush1.msra.mxu0 0.0
    %1295 = vmatprep.subr.mxu0 0.0
    %1296 = vmatpush1.msra.mxu0 0.0
    %1297 = vmatprep.subr.mxu0 0.0
    %1298 = vmatpush1.msra.mxu0 0.0
    %1299 = vmatprep.subr.mxu0 0.0
    %1300 = vmatpush1.msra.mxu0 0.0
    %1301 = vmatprep.subr.mxu0 0.0
    %1302 = vmatpush1.msra.mxu0 0.0
    %1303 = vmatprep.mubr.f32.mxu0 0.0
    %1304 = vmatmul.mubr.f32.gmra.mrb[0].mxu0 %v1237
    %v1305 = vpop.f32.mrb[0].mxu0
    %v1306 = vadd.f32 0.0, %v1305
    %v1307 = vpop.f32.mrb[0].mxu0
    %1308 = vdwg.mxu0
    %1309 = vrot.lane.b32.xlu0 %v135, 104
    %v1310 = vpop.permute.xlu0 %1309
    %1311 = vrot.lane.b32.xlu0 %v135, 72
    %v1312 = vpop.permute.xlu0 %1311
    %v1313 = vsel %vm141, %v1310, 0
    %v1315 = vsel %vm141, %v1312, 0
    %1317 = vmatprep.subr.mxu0 0.0
    %1318 = vmatpush1.xpose.msra.mxu0 %v1315
    %1319 = vmatprep.subr.mxu0 0.0
    %1320 = vmatpush1.xpose.msra.mxu0 0.0
    %1321 = vmatprep.subr.mxu0 0.0
    %1322 = vmatpush1.xpose.msra.mxu0 0.0
    %1323 = vmatprep.subr.mxu0 0.0
    %1324 = vmatpush1.xpose.msra.mxu0 0.0
    %1325 = vmatprep.subr.mxu0 0.0
    %1326 = vmatpush1.xpose.msra.mxu0 0.0
    %1327 = vmatprep.subr.mxu0 0.0
    %1328 = vmatpush1.xpose.msra.mxu0 0.0
    %1329 = vmatprep.subr.mxu0 0.0
    %1330 = vmatpush1.xpose.msra.mxu0 0.0
    %1331 = vmatprep.subr.mxu0 0.0
    %1332 = vmatpush1.xpose.msra.mxu0 0.0
    %1333 = vmatprep.subr.mxu0 0.0
    %1334 = vmatpush1.xpose.msra.mxu0 0.0
    %1335 = vmatprep.subr.mxu0 0.0
    %1336 = vmatpush1.xpose.msra.mxu0 0.0
    %1337 = vmatprep.subr.mxu0 0.0
    %1338 = vmatpush1.xpose.msra.mxu0 0.0
    %1339 = vmatprep.subr.mxu0 0.0
    %1340 = vmatpush1.xpose.msra.mxu0 0.0
    %1341 = vmatprep.subr.mxu0 0.0
    %1342 = vmatpush1.xpose.msra.mxu0 0.0
    %1343 = vmatprep.subr.mxu0 0.0
    %1344 = vmatpush1.xpose.msra.mxu0 0.0
    %1345 = vmatprep.subr.mxu0 0.0
    %1346 = vmatpush1.xpose.msra.mxu0 0.0
    %1347 = vmatprep.subr.mxu0 0.0
    %1348 = vmatpush1.xpose.msra.mxu0 0.0
    %1349 = vmatprep.subr.mxu0 0.0
    %1350 = vmatpush1.xpose.msra.mxu0 0.0
    %1351 = vmatprep.subr.mxu0 0.0
    %1352 = vmatpush1.xpose.msra.mxu0 0.0
    %1353 = vmatprep.subr.mxu0 0.0
    %1354 = vmatpush1.xpose.msra.mxu0 0.0
    %1355 = vmatprep.subr.mxu0 0.0
    %1356 = vmatpush1.xpose.msra.mxu0 0.0
    %1357 = vmatprep.subr.mxu0 0.0
    %1358 = vmatpush1.xpose.msra.mxu0 0.0
    %1359 = vmatprep.subr.mxu0 0.0
    %1360 = vmatpush1.xpose.msra.mxu0 0.0
    %1361 = vmatprep.subr.mxu0 0.0
    %1362 = vmatpush1.xpose.msra.mxu0 0.0
    %1363 = vmatprep.subr.mxu0 0.0
    %1364 = vmatpush1.xpose.msra.mxu0 0.0
    %1365 = vmatprep.subr.mxu0 0.0
    %1366 = vmatpush1.xpose.msra.mxu0 0.0
    %1367 = vmatprep.subr.mxu0 0.0
    %1368 = vmatpush1.xpose.msra.mxu0 0.0
    %1369 = vmatprep.subr.mxu0 0.0
    %1370 = vmatpush1.xpose.msra.mxu0 0.0
    %1371 = vmatprep.subr.mxu0 0.0
    %1372 = vmatpush1.xpose.msra.mxu0 0.0
    %1373 = vmatprep.subr.mxu0 0.0
    %1374 = vmatpush1.xpose.msra.mxu0 0.0
    %1375 = vmatprep.subr.mxu0 0.0
    %1376 = vmatpush1.xpose.msra.mxu0 0.0
    %1377 = vmatprep.subr.mxu0 0.0
    %1378 = vmatpush1.xpose.msra.mxu0 0.0
    %1379 = vmatprep.subr.mxu0 0.0
    %1380 = vmatpush1.xpose.msra.mxu0 0.0
    %1381 = vmatprep.mubr.f32.mxu0 0.0
    %1382 = vmatmul.mubr.f32.gmra.mrb[0].mxu0 %v1313
    %v1383 = vpop.f32.mrb[0].mxu0
    %v1384 = vadd.f32 0.0, %v1383
    %v1385 = vpop.f32.mrb[0].mxu0
    %1386 = vdwg.mxu0
    %v1387 = vsel %vm141, %v1384, -inf
    %1388 = vmax.xlane.f32.xlu0 %v1387
    %v1389 = vpop.xlane.xlu0 %1388
    %v1390 = vsub.f32 %v1384, %v1389
    %v1391 = vmul.f32 %v1390, 1.442695
    %v1392 = vpow.pop %v1391
    %v1393 = vsel %vm141, %v1392, 0.0
    %1394 = vadd.xlane.f32.xlu0 %v1393
    %v1395 = vpop.xlane.xlu0 %1394
    %v1396 = vrcp.pop %v1395
    %v1397 = vmul.f32 %v1392, %v1396
    %1398 = vrot.lane.b32.xlu0 %v135, 40
    %v1399 = vpop.permute.xlu0 %1398
    %v1402 = vsel %vm141, %v1397, 0
    %1404 = vmatprep.subr.mxu0 0.0
    %1405 = vmatpush1.msra.mxu0 %v1399
    %1406 = vmatprep.subr.mxu0 0.0
    %1407 = vmatpush1.msra.mxu0 0.0
    %1408 = vmatprep.subr.mxu0 0.0
    %1409 = vmatpush1.msra.mxu0 0.0
    %1410 = vmatprep.subr.mxu0 0.0
    %1411 = vmatpush1.msra.mxu0 0.0
    %1412 = vmatprep.subr.mxu0 0.0
    %1413 = vmatpush1.msra.mxu0 0.0
    %1414 = vmatprep.subr.mxu0 0.0
    %1415 = vmatpush1.msra.mxu0 0.0
    %1416 = vmatprep.subr.mxu0 0.0
    %1417 = vmatpush1.msra.mxu0 0.0
    %1418 = vmatprep.subr.mxu0 0.0
    %1419 = vmatpush1.msra.mxu0 0.0
    %1420 = vmatprep.subr.mxu0 0.0
    %1421 = vmatpush1.msra.mxu0 0.0
    %1422 = vmatprep.subr.mxu0 0.0
    %1423 = vmatpush1.msra.mxu0 0.0
    %1424 = vmatprep.subr.mxu0 0.0
    %1425 = vmatpush1.msra.mxu0 0.0
    %1426 = vmatprep.subr.mxu0 0.0
    %1427 = vmatpush1.msra.mxu0 0.0
    %1428 = vmatprep.subr.mxu0 0.0
    %1429 = vmatpush1.msra.mxu0 0.0
    %1430 = vmatprep.subr.mxu0 0.0
    %1431 = vmatpush1.msra.mxu0 0.0
    %1432 = vmatprep.subr.mxu0 0.0
    %1433 = vmatpush1.msra.mxu0 0.0
    %1434 = vmatprep.subr.mxu0 0.0
    %1435 = vmatpush1.msra.mxu0 0.0
    %1436 = vmatprep.subr.mxu0 0.0
    %1437 = vmatpush1.msra.mxu0 0.0
    %1438 = vmatprep.subr.mxu0 0.0
    %1439 = vmatpush1.msra.mxu0 0.0
    %1440 = vmatprep.subr.mxu0 0.0
    %1441 = vmatpush1.msra.mxu0 0.0
    %1442 = vmatprep.subr.mxu0 0.0
    %1443 = vmatpush1.msra.mxu0 0.0
    %1444 = vmatprep.subr.mxu0 0.0
    %1445 = vmatpush1.msra.mxu0 0.0
    %1446 = vmatprep.subr.mxu0 0.0
    %1447 = vmatpush1.msra.mxu0 0.0
    %1448 = vmatprep.subr.mxu0 0.0
    %1449 = vmatpush1.msra.mxu0 0.0
    %1450 = vmatprep.subr.mxu0 0.0
    %1451 = vmatpush1.msra.mxu0 0.0
    %1452 = vmatprep.subr.mxu0 0.0
    %1453 = vmatpush1.msra.mxu0 0.0
    %1454 = vmatprep.subr.mxu0 0.0
    %1455 = vmatpush1.msra.mxu0 0.0
    %1456 = vmatprep.subr.mxu0 0.0
    %1457 = vmatpush1.msra.mxu0 0.0
    %1458 = vmatprep.subr.mxu0 0.0
    %1459 = vmatpush1.msra.mxu0 0.0
    %1460 = vmatprep.subr.mxu0 0.0
    %1461 = vmatpush1.msra.mxu0 0.0
    %1462 = vmatprep.subr.mxu0 0.0
    %1463 = vmatpush1.msra.mxu0 0.0
    %1464 = vmatprep.subr.mxu0 0.0
    %1465 = vmatpush1.msra.mxu0 0.0
    %1466 = vmatprep.subr.mxu0 0.0
    %1467 = vmatpush1.msra.mxu0 0.0
    %1468 = vmatprep.mubr.f32.mxu0 0.0
    %1469 = vmatmul.mubr.f32.gmra.mrb[0].mxu0 %v1402
    %v1470 = vpop.f32.mrb[0].mxu0
    %v1471 = vadd.f32 0.0, %v1470
    %v1472 = vpop.f32.mrb[0].mxu0
    %1473 = vdwg.mxu0
    %1475 = vrot.lane.b32.xlu0 %v1141, 8
    %v1476 = vpop.permute.xlu0 %1475
    %1479 = vrot.lane.b32.xlu0 %v1306, 16
    %v1480 = vpop.permute.xlu0 %1479
    %1483 = vrot.lane.b32.xlu0 %v1471, 24
    %v1484 = vpop.permute.xlu0 %1483
    %v1486 = vsel %vm141, %v976, %v1476
    %v1487 = vsel %vm811, %v1486, %v1480
    %v1488 = vsel %vm813, %v1487, %v1484
    %v1489 = vld [vmem:[%s2] sm:$0xff]
    %v1490 = vld [vmem:[%s2 + $0x8] sm:$0xff]
    %v1491 = vld [vmem:[%s2 + $0x10] sm:$0xff]
    %v1492 = vld [vmem:[%s2 + $0x18] sm:$0xff]
    %v1493 = vlaneseq
    %v1494 = vshrl.u32 %v1493, 7
    %v1495 = vsub.s32 0, %v1494
    %v1496 = vrot.slane %v39, %v1495
    %v1498 = vsel %vm56, %v814, 0
    %v1501 = vsel %vm56, %v1488, 0
    %1503 = vmatprep.subr.mxu0 0.0
    %1504 = vmatpush1.msra.mxu0 %v1489
    %1505 = vmatprep.subr.mxu0 0.0
    %1506 = vmatpush1.msra.mxu0 %v1490
    %1507 = vmatprep.subr.mxu0 0.0
    %1508 = vmatpush1.msra.mxu0 %v1491
    %1509 = vmatprep.subr.mxu0 0.0
    %1510 = vmatpush1.msra.mxu0 %v1492
    %1511 = vmatprep.subr.mxu0 0.0
    %1512 = vmatpush1.msra.mxu0 0.0
    %1513 = vmatprep.subr.mxu0 0.0
    %1514 = vmatpush1.msra.mxu0 0.0
    %1515 = vmatprep.subr.mxu0 0.0
    %1516 = vmatpush1.msra.mxu0 0.0
    %1517 = vmatprep.subr.mxu0 0.0
    %1518 = vmatpush1.msra.mxu0 0.0
    %1519 = vmatprep.subr.mxu0 0.0
    %1520 = vmatpush1.msra.mxu0 0.0
    %1521 = vmatprep.subr.mxu0 0.0
    %1522 = vmatpush1.msra.mxu0 0.0
    %1523 = vmatprep.subr.mxu0 0.0
    %1524 = vmatpush1.msra.mxu0 0.0
    %1525 = vmatprep.subr.mxu0 0.0
    %1526 = vmatpush1.msra.mxu0 0.0
    %1527 = vmatprep.subr.mxu0 0.0
    %1528 = vmatpush1.msra.mxu0 0.0
    %1529 = vmatprep.subr.mxu0 0.0
    %1530 = vmatpush1.msra.mxu0 0.0
    %1531 = vmatprep.subr.mxu0 0.0
    %1532 = vmatpush1.msra.mxu0 0.0
    %1533 = vmatprep.subr.mxu0 0.0
    %1534 = vmatpush1.msra.mxu0 0.0
    %1535 = vmatprep.subr.mxu0 0.0
    %1536 = vmatpush1.msra.mxu0 0.0
    %1537 = vmatprep.subr.mxu0 0.0
    %1538 = vmatpush1.msra.mxu0 0.0
    %1539 = vmatprep.subr.mxu0 0.0
    %1540 = vmatpush1.msra.mxu0 0.0
    %1541 = vmatprep.subr.mxu0 0.0
    %1542 = vmatpush1.msra.mxu0 0.0
    %1543 = vmatprep.subr.mxu0 0.0
    %1544 = vmatpush1.msra.mxu0 0.0
    %1545 = vmatprep.subr.mxu0 0.0
    %1546 = vmatpush1.msra.mxu0 0.0
    %1547 = vmatprep.subr.mxu0 0.0
    %1548 = vmatpush1.msra.mxu0 0.0
    %1549 = vmatprep.subr.mxu0 0.0
    %1550 = vmatpush1.msra.mxu0 0.0
    %1551 = vmatprep.subr.mxu0 0.0
    %1552 = vmatpush1.msra.mxu0 0.0
    %1553 = vmatprep.subr.mxu0 0.0
    %1554 = vmatpush1.msra.mxu0 0.0
    %1555 = vmatprep.subr.mxu0 0.0
    %1556 = vmatpush1.msra.mxu0 0.0
    %1557 = vmatprep.subr.mxu0 0.0
    %1558 = vmatpush1.msra.mxu0 0.0
    %1559 = vmatprep.subr.mxu0 0.0
    %1560 = vmatpush1.msra.mxu0 0.0
    %1561 = vmatprep.subr.mxu0 0.0
    %1562 = vmatpush1.msra.mxu0 0.0
    %1563 = vmatprep.subr.mxu0 0.0
    %1564 = vmatpush1.msra.mxu0 0.0
    %1565 = vmatprep.subr.mxu0 0.0
    %1566 = vmatpush1.msra.mxu0 0.0
    %1567 = vmatprep.mubr.f32.mxu0 0.0
    %1568 = vmatmul.mubr.f32.gmra.mrb[0].mxu0 %v1498
    %v1569 = vpop.f32.mrb[0].mxu0
    %v1570 = vadd.f32 %v1496, %v1569
    %v1571 = vpop.f32.mrb[0].mxu0
    %1572 = vmatprep.mubr.f32.mxu0 0.0
    %1573 = vmatmul.mubr.f32.gmra.mrb[0].mxu0 %v1501
    %v1574 = vpop.f32.mrb[0].mxu0
    %v1575 = vadd.f32 %v1496, %v1574
    %v1576 = vpop.f32.mrb[0].mxu0
    %1577 = vdwg.mxu0
    %v1578 = vadd.f32 %v46, %v1570
    %v1579 = vadd.f32 %v47, %v1575
    %v1580 = vsel %vm56, %v1578, 0.0
    %1581 = vadd.xlane.f32.xlu0 %v1580
    %v1582 = vpop.xlane.xlu0 %1581
    %v1583 = vsel %vm56, %v1579, 0.0
    %1584 = vadd.xlane.f32.xlu0 %v1583
    %v1585 = vpop.xlane.xlu0 %1584
    %v1586 = vrcp.pop 32.0
    %v1587 = vmul.f32 %v1582, %v1586
    %v1588 = vmul.f32 %v1585, %v1586
    %v1589 = vsub.f32 %v1578, %v1587
    %v1590 = vsub.f32 %v1579, %v1588
    %v1591 = vmul.f32 %v1589, %v1589
    %v1592 = vmul.f32 %v1590, %v1590
    %v1593 = vsel %vm56, %v1591, 0.0
    %1594 = vadd.xlane.f32.xlu0 %v1593
    %v1595 = vpop.xlane.xlu0 %1594
    %v1596 = vsel %vm56, %v1592, 0.0
    %1597 = vadd.xlane.f32.xlu0 %v1596
    %v1598 = vpop.xlane.xlu0 %1597
    %v1599 = vmul.f32 %v1595, %v1586
    %v1600 = vmul.f32 %v1598, %v1586
    %v1601 = vadd.f32 %v1599, 1e-05
    %v1602 = vadd.f32 %v1600, 1e-05
    %v1603 = vrsqrt.pop %v1601
    %v1604 = vrsqrt.pop %v1602
    %v1605 = vmul.f32 %v1589, %v1603
    %v1606 = vmul.f32 %v1590, %v1604
    %v1607 = vlaneseq
    %v1608 = vshrl.u32 %v1607, 7
    %v1609 = vsub.s32 0, %v1608
    %v1610 = vrot.slane %v40, %v1609
    %v1611 = vmul.f32 %v1605, %v1610
    %v1612 = vmul.f32 %v1606, %v1610
    %v1613 = vlaneseq
    %v1614 = vshrl.u32 %v1613, 7
    %v1615 = vsub.s32 0, %v1614
    %v1616 = vrot.slane %v41, %v1615
    %v1617 = vadd.f32 %v1611, %v1616
    %v1618 = vadd.f32 %v1612, %v1616
    %v1619 = vld [vmem:[%s3] sm:$0xff]
    %v1620 = vld [vmem:[%s3 + $0x8] sm:$0xff]
    %v1621 = vld [vmem:[%s3 + $0x10] sm:$0xff]
    %v1622 = vld [vmem:[%s3 + $0x18] sm:$0xff]
    %v1623 = vlaneseq
    %v1624 = vshrl.u32 %v1623, 7
    %v1625 = vsub.s32 0, %v1624
    %v1626 = vrot.slane %v42, %v1625
    %v1628 = vsel %vm56, %v1617, 0
    %v1631 = vsel %vm56, %v1618, 0
    %1633 = vmatprep.subr.mxu0 0.0
    %1634 = vmatpush1.msra.mxu0 %v1619
    %1635 = vmatprep.subr.mxu0 0.0
    %1636 = vmatpush1.msra.mxu0 %v1620
    %1637 = vmatprep.subr.mxu0 0.0
    %1638 = vmatpush1.msra.mxu0 %v1621
    %1639 = vmatprep.subr.mxu0 0.0
    %1640 = vmatpush1.msra.mxu0 %v1622
    %1641 = vmatprep.subr.mxu0 0.0
    %1642 = vmatpush1.msra.mxu0 0.0
    %1643 = vmatprep.subr.mxu0 0.0
    %1644 = vmatpush1.msra.mxu0 0.0
    %1645 = vmatprep.subr.mxu0 0.0
    %1646 = vmatpush1.msra.mxu0 0.0
    %1647 = vmatprep.subr.mxu0 0.0
    %1648 = vmatpush1.msra.mxu0 0.0
    %1649 = vmatprep.subr.mxu0 0.0
    %1650 = vmatpush1.msra.mxu0 0.0
    %1651 = vmatprep.subr.mxu0 0.0
    %1652 = vmatpush1.msra.mxu0 0.0
    %1653 = vmatprep.subr.mxu0 0.0
    %1654 = vmatpush1.msra.mxu0 0.0
    %1655 = vmatprep.subr.mxu0 0.0
    %1656 = vmatpush1.msra.mxu0 0.0
    %1657 = vmatprep.subr.mxu0 0.0
    %1658 = vmatpush1.msra.mxu0 0.0
    %1659 = vmatprep.subr.mxu0 0.0
    %1660 = vmatpush1.msra.mxu0 0.0
    %1661 = vmatprep.subr.mxu0 0.0
    %1662 = vmatpush1.msra.mxu0 0.0
    %1663 = vmatprep.subr.mxu0 0.0
    %1664 = vmatpush1.msra.mxu0 0.0
    %1665 = vmatprep.subr.mxu0 0.0
    %1666 = vmatpush1.msra.mxu0 0.0
    %1667 = vmatprep.subr.mxu0 0.0
    %1668 = vmatpush1.msra.mxu0 0.0
    %1669 = vmatprep.subr.mxu0 0.0
    %1670 = vmatpush1.msra.mxu0 0.0
    %1671 = vmatprep.subr.mxu0 0.0
    %1672 = vmatpush1.msra.mxu0 0.0
    %1673 = vmatprep.subr.mxu0 0.0
    %1674 = vmatpush1.msra.mxu0 0.0
    %1675 = vmatprep.subr.mxu0 0.0
    %1676 = vmatpush1.msra.mxu0 0.0
    %1677 = vmatprep.subr.mxu0 0.0
    %1678 = vmatpush1.msra.mxu0 0.0
    %1679 = vmatprep.subr.mxu0 0.0
    %1680 = vmatpush1.msra.mxu0 0.0
    %1681 = vmatprep.subr.mxu0 0.0
    %1682 = vmatpush1.msra.mxu0 0.0
    %1683 = vmatprep.subr.mxu0 0.0
    %1684 = vmatpush1.msra.mxu0 0.0
    %1685 = vmatprep.subr.mxu0 0.0
    %1686 = vmatpush1.msra.mxu0 0.0
    %1687 = vmatprep.subr.mxu0 0.0
    %1688 = vmatpush1.msra.mxu0 0.0
    %1689 = vmatprep.subr.mxu0 0.0
    %1690 = vmatpush1.msra.mxu0 0.0
    %1691 = vmatprep.subr.mxu0 0.0
    %1692 = vmatpush1.msra.mxu0 0.0
    %1693 = vmatprep.subr.mxu0 0.0
    %1694 = vmatpush1.msra.mxu0 0.0
    %1695 = vmatprep.subr.mxu0 0.0
    %1696 = vmatpush1.msra.mxu0 0.0
    %1697 = vmatprep.mubr.f32.mxu0 0.0
    %1698 = vmatmul.mubr.f32.gmra.mrb[0].mxu0 %v1628
    %v1699 = vpop.f32.mrb[0].mxu0
    %v1700 = vadd.f32 %v1626, %v1699
    %v1701 = vpop.f32.mrb[0].mxu0
    %1702 = vmatprep.mubr.f32.mxu0 0.0
    %1703 = vmatmul.mubr.f32.gmra.mrb[0].mxu0 %v1631
    %v1704 = vpop.f32.mrb[0].mxu0
    %v1705 = vadd.f32 %v1626, %v1704
    %v1706 = vpop.f32.mrb[0].mxu0
    %1707 = vdwg.mxu0
    %v1708 = vmax.f32 %v1700, 0.0
    %v1709 = vmax.f32 %v1705, 0.0
    %v1710 = vld [vmem:[%s4] sm:$0xff]
    %v1711 = vld [vmem:[%s4 + $0x8] sm:$0xff]
    %v1712 = vld [vmem:[%s4 + $0x10] sm:$0xff]
    %v1713 = vld [vmem:[%s4 + $0x18] sm:$0xff]
    %v1714 = vld [vmem:[%s4 + $0x20] sm:$0xff]
    %v1715 = vld [vmem:[%s4 + $0x28] sm:$0xff]
    %v1716 = vld [vmem:[%s4 + $0x30] sm:$0xff]
    %v1717 = vld [vmem:[%s4 + $0x38] sm:$0xff]
    %v1718 = vlaneseq
    %v1719 = vshrl.u32 %v1718, 7
    %v1720 = vsub.s32 0, %v1719
    %v1721 = vrot.slane %v43, %v1720
    %vm1722 = vcmask 523264
    %v1724 = vsel %vm1722, %v1708, 0
    %v1727 = vsel %vm1722, %v1709, 0
    %1729 = vmatprep.subr.mxu0 0.0
    %1730 = vmatpush1.msra.mxu0 %v1710
    %1731 = vmatprep.subr.mxu0 0.0
    %1732 = vmatpush1.msra.mxu0 %v1711
    %1733 = vmatprep.subr.mxu0 0.0
    %1734 = vmatpush1.msra.mxu0 %v1712
    %1735 = vmatprep.subr.mxu0 0.0
    %1736 = vmatpush1.msra.mxu0 %v1713
    %1737 = vmatprep.subr.mxu0 0.0
    %1738 = vmatpush1.msra.mxu0 %v1714
    %1739 = vmatprep.subr.mxu0 0.0
    %1740 = vmatpush1.msra.mxu0 %v1715
    %1741 = vmatprep.subr.mxu0 0.0
    %1742 = vmatpush1.msra.mxu0 %v1716
    %1743 = vmatprep.subr.mxu0 0.0
    %1744 = vmatpush1.msra.mxu0 %v1717
    %1745 = vmatprep.subr.mxu0 0.0
    %1746 = vmatpush1.msra.mxu0 0.0
    %1747 = vmatprep.subr.mxu0 0.0
    %1748 = vmatpush1.msra.mxu0 0.0
    %1749 = vmatprep.subr.mxu0 0.0
    %1750 = vmatpush1.msra.mxu0 0.0
    %1751 = vmatprep.subr.mxu0 0.0
    %1752 = vmatpush1.msra.mxu0 0.0
    %1753 = vmatprep.subr.mxu0 0.0
    %1754 = vmatpush1.msra.mxu0 0.0
    %1755 = vmatprep.subr.mxu0 0.0
    %1756 = vmatpush1.msra.mxu0 0.0
    %1757 = vmatprep.subr.mxu0 0.0
    %1758 = vmatpush1.msra.mxu0 0.0
    %1759 = vmatprep.subr.mxu0 0.0
    %1760 = vmatpush1.msra.mxu0 0.0
    %1761 = vmatprep.subr.mxu0 0.0
    %1762 = vmatpush1.msra.mxu0 0.0
    %1763 = vmatprep.subr.mxu0 0.0
    %1764 = vmatpush1.msra.mxu0 0.0
    %1765 = vmatprep.subr.mxu0 0.0
    %1766 = vmatpush1.msra.mxu0 0.0
    %1767 = vmatprep.subr.mxu0 0.0
    %1768 = vmatpush1.msra.mxu0 0.0
    %1769 = vmatprep.subr.mxu0 0.0
    %1770 = vmatpush1.msra.mxu0 0.0
    %1771 = vmatprep.subr.mxu0 0.0
    %1772 = vmatpush1.msra.mxu0 0.0
    %1773 = vmatprep.subr.mxu0 0.0
    %1774 = vmatpush1.msra.mxu0 0.0
    %1775 = vmatprep.subr.mxu0 0.0
    %1776 = vmatpush1.msra.mxu0 0.0
    %1777 = vmatprep.subr.mxu0 0.0
    %1778 = vmatpush1.msra.mxu0 0.0
    %1779 = vmatprep.subr.mxu0 0.0
    %1780 = vmatpush1.msra.mxu0 0.0
    %1781 = vmatprep.subr.mxu0 0.0
    %1782 = vmatpush1.msra.mxu0 0.0
    %1783 = vmatprep.subr.mxu0 0.0
    %1784 = vmatpush1.msra.mxu0 0.0
    %1785 = vmatprep.subr.mxu0 0.0
    %1786 = vmatpush1.msra.mxu0 0.0
    %1787 = vmatprep.subr.mxu0 0.0
    %1788 = vmatpush1.msra.mxu0 0.0
    %1789 = vmatprep.subr.mxu0 0.0
    %1790 = vmatpush1.msra.mxu0 0.0
    %1791 = vmatprep.subr.mxu0 0.0
    %1792 = vmatpush1.msra.mxu0 0.0
    %1793 = vmatprep.mubr.f32.mxu0 0.0
    %1794 = vmatmul.mubr.f32.gmra.mrb[0].mxu0 %v1724
    %v1795 = vpop.f32.mrb[0].mxu0
    %v1796 = vadd.f32 %v1721, %v1795
    %v1797 = vpop.f32.mrb[0].mxu0
    %1798 = vmatprep.mubr.f32.mxu0 0.0
    %1799 = vmatmul.mubr.f32.gmra.mrb[0].mxu0 %v1727
    %v1800 = vpop.f32.mrb[0].mxu0
    %v1801 = vadd.f32 %v1721, %v1800
    %v1802 = vpop.f32.mrb[0].mxu0
    %1803 = vdwg.mxu0
    %v1804 = vadd.f32 %v1617, %v1796
    %v1805 = vadd.f32 %v1618, %v1801
    %v1806 = vsel %vm56, %v1804, 0.0
    %1807 = vadd.xlane.f32.xlu0 %v1806
    %v1808 = vpop.xlane.xlu0 %1807
    %v1809 = vsel %vm56, %v1805, 0.0
    %1810 = vadd.xlane.f32.xlu0 %v1809
    %v1811 = vpop.xlane.xlu0 %1810
    %v1812 = vmul.f32 %v1808, %v1586
    %v1813 = vmul.f32 %v1811, %v1586
    %v1814 = vsub.f32 %v1804, %v1812
    %v1815 = vsub.f32 %v1805, %v1813
    %v1816 = vmul.f32 %v1814, %v1814
    %v1817 = vmul.f32 %v1815, %v1815
    %v1818 = vsel %vm56, %v1816, 0.0
    %1819 = vadd.xlane.f32.xlu0 %v1818
    %v1820 = vpop.xlane.xlu0 %1819
    %v1821 = vsel %vm56, %v1817, 0.0
    %1822 = vadd.xlane.f32.xlu0 %v1821
    %v1823 = vpop.xlane.xlu0 %1822
    %v1824 = vmul.f32 %v1820, %v1586
    %v1825 = vmul.f32 %v1823, %v1586
    %v1826 = vadd.f32 %v1824, 1e-05
    %v1827 = vadd.f32 %v1825, 1e-05
    %v1828 = vrsqrt.pop %v1826
    %v1829 = vrsqrt.pop %v1827
    %v1830 = vmul.f32 %v1814, %v1828
    %v1831 = vmul.f32 %v1815, %v1829
    %v1832 = vlaneseq
    %v1833 = vshrl.u32 %v1832, 7
    %v1834 = vsub.s32 0, %v1833
    %v1835 = vrot.slane %v44, %v1834
    %v1836 = vmul.f32 %v1830, %v1835
    %v1837 = vmul.f32 %v1831, %v1835
    %v1838 = vlaneseq
    %v1839 = vshrl.u32 %v1838, 7
    %v1840 = vsub.s32 0, %v1839
    %v1841 = vrot.slane %v45, %v1840
    %v1842 = vadd.f32 %v1836, %v1841
    %v1843 = vadd.f32 %v1837, %v1841
    %1844 = vst.msk [vmem:[#allocation5] sm:$0xff] %vm56, %v1842
    %1845 = vst.msk [vmem:[#allocation5 + $0x8] sm:$0xff] %vm56, %v1843
    // Predicated region
    $region30: #{tpu_custom_call.1} parent=1 // pred_check
      _
    $region31: #{tpu_custom_call.1} parent=1 // pred_check_branch
      %1847 = sbr.rel (0) target = $region33
    $region32: #{tpu_custom_call.1} parent=1 // pred_region
      %s1849 = ssub.s32 256, 256
      %1850 = vsyncadd [#allocation4], %s1849
      %s1851 = sshll.u32 [#allocation5], 4
      %s1852 = int_to_ptr.vmem [resolvable:$true] %s1851
      %1857 = dma.vmem_to_hbm [thread:$0]  %s1852, 256, %s6, [#allocation4], 128, 128, 8
    $region33: #{tpu_custom_call.1} parent=1 // pred_fallthru
      _
    // Predicated region
    $region34: #{tpu_custom_call.1} parent=1 // pred_check
      _
    $region35: #{tpu_custom_call.1} parent=1 // pred_check_branch
      %1859 = sbr.rel (0) target = $region37
    $region36: #{tpu_custom_call.1} parent=1 // pred_region
      %1860 = dma.done [#allocation4], 256
    $region37: #{tpu_custom_call.1} parent=1 // pred_fallthru
      _
    %1861 = vsyncpa [#allocation3], 1
    %1862 = vsyncpa [#allocation4], 1

</llo_original>
